<compile_context>
chip_gen: v7x
topology: tpu7x:2x2x1
jax: 0.10.0
libtpu: 0.0.40
codegen_flags: <defaults>
</compile_context>

<pallas_src>
from functools import partial

import jax
import jax.numpy as jnp
from jax import lax
from jax.experimental import pallas as pl
from jax.experimental.pallas import tpu as pltpu

EPS = 1e-5


def _vmem_limit_bytes():
    # Per-generation VMEM budget: ~3/4 of physical, capped at 100 MiB
    # (v5e/v6e have 128 MiB per core, v7x has 64 MiB per TensorCore).
    try:
        cap = int(pltpu.get_tpu_info().vmem_capacity_bytes)
    except Exception:
        cap = 64 * 1024 * 1024
    return int(min(cap * 3 // 4, 100 * 1024 * 1024))


def _row_tile(rows, cap=2048):
    """Largest multiple of 8 that divides `rows`, <= cap (>=2 steps if possible)."""
    cap = max(8, min(cap, rows // 2 if rows >= 16 else rows))
    best = 8
    for d in range(8, cap + 1, 8):
        if rows % d == 0:
            best = d
    return best


# ---------------------------------------------------------------------------
# Pass 1: conv1(x) -> z1 (bf16) + partial per-channel stats of z1 and of
# skip-conv(x).  Row-tiled, fully parallel grid (partials summed in wrapper).
# ---------------------------------------------------------------------------
def _stats1_kernel(x_ref, w1_ref, ws_ref, z1_ref, s1_ref, q1_ref, ss_ref, qs_ref):
    x = x_ref[...]                                             # (TQ, Cin) bf16
    z1 = jnp.dot(x, w1_ref[...], preferred_element_type=jnp.float32)
    zs = jnp.dot(x, ws_ref[...], preferred_element_type=jnp.float32)
    z1_ref[...] = z1.astype(z1_ref.dtype)
    s1_ref[...] = jnp.sum(z1, axis=0, keepdims=True).reshape(s1_ref.shape)
    q1_ref[...] = jnp.sum(z1 * z1, axis=0, keepdims=True).reshape(q1_ref.shape)
    ss_ref[...] = jnp.sum(zs, axis=0, keepdims=True).reshape(ss_ref.shape)
    qs_ref[...] = jnp.sum(zs * zs, axis=0, keepdims=True).reshape(qs_ref.shape)


# ---------------------------------------------------------------------------
# Pass 2: BN1 affine + ReLU on z1, then 3x3 conv (stride 1, pad 1) via a
# zero-padded row buffer; writes z2 (bf16) and its partial stats.
# ---------------------------------------------------------------------------
def _conv2_kernel(H, W, PAD, fused, z1_ref, w2_ref, a1_ref, c1_ref,
                  ml_ref, mr_ref, z2_ref, s2_ref, q2_ref, ypad_ref):
    HW = H * W
    C1 = z1_ref.shape[1]
    f32 = jnp.float32

    # BN1 affine + ReLU (conv bias folded away by the training-mode BN).
    y1 = jnp.maximum(z1_ref[...] * a1_ref[...] + c1_ref[...], 0.0)  # (HW,C1) f32

    # Zero-padded row buffer (PAD >= W+1 zero rows above and below the image)
    # so every 3x3 tap is a plain shifted row-slice: no rolls, no iota/mod.
    ypad_ref[pl.ds(0, PAD), :] = jnp.zeros((PAD, C1), f32)
    ypad_ref[pl.ds(PAD + HW, PAD), :] = jnp.zeros((PAD, C1), f32)
    ypad_ref[pl.ds(PAD, HW), :] = y1

    mask_l = ml_ref[...]      # zeros where out-column == 0      (dx = -1 taps)
    mask_r = mr_ref[...]      # zeros where out-column == W - 1  (dx = +1 taps)

    if fused:
        # Lane-aligned C1: fuse the 3 dx taps per dy into one K=3*C1 matmul
        # (3 MXU pushes instead of 9, masks folded into the pack).
        acc = None
        for j, dy in enumerate((-1, 0, 1)):
            base = PAD + dy * W
            left = ypad_ref[pl.ds(base - 1, HW), :] * mask_l
            mid = ypad_ref[pl.ds(base, HW), :]
            right = ypad_ref[pl.ds(base + 1, HW), :] * mask_r
            packed = jnp.concatenate([left, mid, right], axis=1).astype(jnp.bfloat16)
            contrib = jnp.dot(packed, w2_ref[j], preferred_element_type=f32)
            acc = contrib if acc is None else acc + contrib
    else:
        # Small / unaligned C1: 9 shifted-slice MXU matmuls; accumulator is
        # initialised with the (unmasked) centre tap instead of zeros.
        def tap(offset, mask):
            v = ypad_ref[pl.ds(offset, HW), :]
            if mask is not None:
                v = v * mask
            return v.astype(jnp.bfloat16)

        acc = jnp.dot(y1.astype(jnp.bfloat16), w2_ref[4],
                      preferred_element_type=f32)
        t = 0
        for dy in (-1, 0, 1):
            for dx in (-1, 0, 1):
                if not (dy == 0 and dx == 0):
                    m = mask_l if dx == -1 else (mask_r if dx == 1 else None)
                    acc = acc + jnp.dot(tap(PAD + dy * W + dx, m), w2_ref[t],
                                        preferred_element_type=f32)
                t += 1

    z2_ref[...] = acc.astype(z2_ref.dtype)
    s2_ref[...] = jnp.sum(acc, axis=0, keepdims=True).reshape(s2_ref.shape)
    q2_ref[...] = jnp.sum(acc * acc, axis=0, keepdims=True).reshape(q2_ref.shape)


# ---------------------------------------------------------------------------
# Pass 3: partial per-channel stats of conv3(relu(BN2(z2))).  Row-tiled.
# ---------------------------------------------------------------------------
def _stats3_kernel(z2_ref, w3_ref, a2_ref, c2_ref, s3_ref, q3_ref):
    y2 = jnp.maximum(z2_ref[...] * a2_ref[...] + c2_ref[...], 0.0)
    z3 = jnp.dot(y2.astype(jnp.bfloat16), w3_ref[...],
                 preferred_element_type=jnp.float32)
    s3_ref[...] = jnp.sum(z3, axis=0, keepdims=True).reshape(s3_ref.shape)
    q3_ref[...] = jnp.sum(z3 * z3, axis=0, keepdims=True).reshape(q3_ref.shape)


# ---------------------------------------------------------------------------
# Pass 4: apply BN2 / BN3 / BN_skip affines, residual add, final ReLU.
# ---------------------------------------------------------------------------
def _final_kernel(x_ref, z2_ref, ws_ref, w3_ref, as_ref, cs_ref,
                  a2_ref, c2_ref, a3_ref, c3_ref, o_ref):
    # Skip path straight into o_ref keeps the (TQ, C4) residual out of
    # registers while the main path is computed.
    resid = jnp.dot(x_ref[...], ws_ref[...], preferred_element_type=jnp.float32)
    o_ref[...] = resid * as_ref[...] + cs_ref[...]

    y2 = jnp.maximum(z2_ref[...] * a2_ref[...] + c2_ref[...], 0.0)
    z3 = jnp.dot(y2.astype(jnp.bfloat16), w3_ref[...],
                 preferred_element_type=jnp.float32)
    o_ref[...] = jnp.maximum(z3 * a3_ref[...] + c3_ref[...] + o_ref[...], 0.0)


# ---------------------------------------------------------------------------
# Wrapper
# ---------------------------------------------------------------------------
def residual_block_forward(x_nchw, params):
    """Pallas forward of the bottleneck ResidualBlock (stride=1, training BN)."""
    N, Cin, H, W = x_nchw.shape
    C1 = params["w1"].shape[0]              # out_channels
    C4 = params["w3"].shape[0]              # out_channels * expansion
    HW = H * W
    R = N * HW
    PAD = -(-(W + 1) // 16) * 16            # >= W+1 zero rows above/below image
    assert HW % 8 == 0, "H*W must be a multiple of 8 for the row tiling"

    f32, bf16 = jnp.float32, jnp.bfloat16
    fused = (C1 % 128 == 0)                 # lane-aligned fused dx-tap path

    # Glue: NCHW -> (N*H*W, C) rows, channels on lanes, bf16 matmul operands.
    x_rows = jnp.transpose(x_nchw, (0, 2, 3, 1)).reshape(R, Cin).astype(bf16)
    w1t = params["w1"][:, :, 0, 0].T.astype(bf16)                    # (Cin, C1)
    w3t = params["w3"][:, :, 0, 0].T.astype(bf16)                    # (C1, C4)
    wst = params["ws"][:, :, 0, 0].T.astype(bf16)                    # (Cin, C4)
    if fused:
        # (3, 3*C1, C1): for each dy, the dx = -1/0/+1 tap weights stacked on K.
        w2t = jnp.stack([
            jnp.concatenate([params["w2"][:, :, ky, kx].T for kx in range(3)],
                            axis=0)
            for ky in range(3)], axis=0).astype(bf16)
    else:
        w2t = jnp.stack([params["w2"][:, :, ky, kx].T                # (9, C1, C1)
                         for ky in range(3) for kx in range(3)], axis=0).astype(bf16)
    # NOTE: conv biases b1/b2/b3 are intentionally not passed to the kernels:
    # a bias added before training-mode BatchNorm cancels in the mean.

    # Column-edge masks for the dx = -1 / dx = +1 taps of the 3x3 conv.
    col = jnp.arange(HW, dtype=jnp.int32) % W
    mask_l = (col != 0).astype(f32).reshape(HW, 1)
    mask_r = (col != W - 1).astype(f32).reshape(HW, 1)

    TQ = _row_tile(R)                        # row tile for the 1x1-conv passes
    G = R // TQ

    def full_spec(shape):
        nd = len(shape)
        return pl.BlockSpec(shape, lambda i: (0,) * nd)

    def tile_spec(t, c):
        return pl.BlockSpec((t, c), lambda i: (i, 0))

    def stat_spec(c):
        return pl.BlockSpec((1, 1, c), lambda i: (i, 0, 0))

    cp = pltpu.CompilerParams(dimension_semantics=("parallel",),
                              vmem_limit_bytes=_vmem_limit_bytes())

    def _affine(s_part, q_part, gamma, beta):
        s = jnp.sum(s_part, axis=0)          # (1, C)
        q = jnp.sum(q_part, axis=0)
        mean = (s / R).reshape(-1)
        var = jnp.maximum((q / R).reshape(-1) - mean * mean, 0.0)
        a = gamma * lax.rsqrt(var + EPS)
        c = beta - a * mean
        return a.reshape(1, -1).astype(f32), c.reshape(1, -1).astype(f32)

    def pstat(g, c):
        return jax.ShapeDtypeStruct((g, 1, c), f32)

    # ---- pass 1: conv1(x) -> z1 + partial stats of z1 and skip-conv(x) -----
    z1, s1p, q1p, ssp, qsp = pl.pallas_call(
        _stats1_kernel,
        grid=(G,),
        in_specs=[tile_spec(TQ, Cin), full_spec((Cin, C1)), full_spec((Cin, C4))],
        out_specs=(tile_spec(TQ, C1), stat_spec(C1), stat_spec(C1),
                   stat_spec(C4), stat_spec(C4)),
        out_shape=(jax.ShapeDtypeStruct((R, C1), bf16),
                   pstat(G, C1), pstat(G, C1), pstat(G, C4), pstat(G, C4)),
        compiler_params=cp,
    )(x_rows, w1t, wst)
    a1, c1 = _affine(s1p, q1p, params["g1"], params["be1"])
    a_s, c_s = _affine(ssp, qsp, params["gs"], params["bes"])

    # ---- pass 2: BN1 + ReLU, 3x3 conv -> z2 (bf16) + its partial stats -----
    z2, s2p, q2p = pl.pallas_call(
        partial(_conv2_kernel, H, W, PAD, fused),
        grid=(N,),
        in_specs=[pl.BlockSpec((HW, C1), lambda n: (n, 0)),
                  full_spec(tuple(w2t.shape)),
                  full_spec((1, C1)), full_spec((1, C1)),
                  full_spec((HW, 1)), full_spec((HW, 1))],
        out_specs=(pl.BlockSpec((HW, C1), lambda n: (n, 0)),
                   stat_spec(C1), stat_spec(C1)),
        out_shape=(jax.ShapeDtypeStruct((R, C1), bf16),
                   pstat(N, C1), pstat(N, C1)),
        scratch_shapes=[pltpu.VMEM((HW + 2 * PAD, C1), f32)],
        compiler_params=cp,
    )(z1, w2t, a1, c1, mask_l, mask_r)
    a2, c2 = _affine(s2p, q2p, params["g2"], params["be2"])

    # ---- pass 3: partial stats of conv3(relu(BN2(z2))) ---------------------
    s3p, q3p = pl.pallas_call(
        _stats3_kernel,
        grid=(G,),
        in_specs=[tile_spec(TQ, C1), full_spec((C1, C4)),
                  full_spec((1, C1)), full_spec((1, C1))],
        out_specs=(stat_spec(C4), stat_spec(C4)),
        out_shape=(pstat(G, C4), pstat(G, C4)),
        compiler_params=cp,
    )(z2, w3t, a2, c2)
    a3, c3 = _affine(s3p, q3p, params["g3"], params["be3"])

    # ---- pass 4: apply affines, residual add, final ReLU -------------------
    out_rows = pl.pallas_call(
        _final_kernel,
        grid=(G,),
        in_specs=[tile_spec(TQ, Cin), tile_spec(TQ, C1),
                  full_spec((Cin, C4)), full_spec((C1, C4)),
                  full_spec((1, C4)), full_spec((1, C4)),
                  full_spec((1, C1)), full_spec((1, C1)),
                  full_spec((1, C4)), full_spec((1, C4))],
        out_specs=tile_spec(TQ, C4),
        out_shape=jax.ShapeDtypeStruct((R, C4), f32),
        compiler_params=cp,
    )(x_rows, z2, wst, w3t, a_s, c_s, a2, c2, a3, c3)

    # Glue: rows -> NCHW.
    return out_rows.reshape(N, H, W, C4).transpose(0, 3, 1, 2)


# -------------------------- pure-JAX reference ------------------------------
def ref_forward(x, p):
    def conv(x, w, b=None, padding=0):
        out = lax.conv_general_dilated(
            x, w, (1, 1), [(padding, padding)] * 2,
            dimension_numbers=("NCHW", "OIHW", "NCHW"))
        if b is not None:
            out = out + b[None, :, None, None]
        return out

    def bn(x, g, b):
        mean = jnp.mean(x, axis=(0, 2, 3), keepdims=True)
        var = jnp.mean((x - mean) ** 2, axis=(0, 2, 3), keepdims=True)
        return ((x - mean) / jnp.sqrt(var + EPS)
                * g[None, :, None, None] + b[None, :, None, None])

    resid = bn(conv(x, p["ws"]), p["gs"], p["bes"])
    y = jax.nn.relu(bn(conv(x, p["w1"], p["b1"]), p["g1"], p["be1"]))
    y = jax.nn.relu(bn(conv(y, p["w2"], p["b2"], padding=1), p["g2"], p["be2"]))
    y = bn(conv(y, p["w3"], p["b3"]), p["g3"], p["be3"])
    return jax.nn.relu(y + resid)


def init_params(key, in_channels, out_channels, expansion=4):
    c4 = out_channels * expansion
    ks = jax.random.split(key, 11)
    p = {
        "w1": 0.1 * jax.random.normal(ks[0], (out_channels, in_channels, 1, 1), jnp.float32),
        "b1": 0.1 * jax.random.normal(ks[1], (out_channels,), jnp.float32),
        "w2": 0.1 * jax.random.normal(ks[2], (out_channels, out_channels, 3, 3), jnp.float32),
        "b2": 0.1 * jax.random.normal(ks[3], (out_channels,), jnp.float32),
        "w3": 0.1 * jax.random.normal(ks[4], (c4, out_channels, 1, 1), jnp.float32),
        "b3": 0.1 * jax.random.normal(ks[5], (c4,), jnp.float32),
        "ws": 0.1 * jax.random.normal(ks[6], (c4, in_channels, 1, 1), jnp.float32),
    }
    for name, c, ki in (("1", out_channels, 7), ("2", out_channels, 8),
                        ("3", c4, 9), ("s", c4, 10)):
        p["g" + name] = 1.0 + 0.1 * jax.random.normal(ks[ki], (c,), jnp.float32)
        p["be" + name] = 0.1 * jax.random.normal(jax.random.fold_in(ks[ki], 1),
                                                 (c,), jnp.float32)
    return p


if __name__ == "__main__":
    key = jax.random.PRNGKey(0)
    kx, kp = jax.random.split(key)
    N, Cin, H, W = 2, 4, 16, 16
    out_channels = 4                                   # -> 16 output channels
    x = jax.random.normal(kx, (N, Cin, H, W), jnp.float32)
    params = init_params(kp, Cin, out_channels)

    out = residual_block_forward(x, params)
    out = jax.block_until_ready(out)
    assert out.shape == (N, out_channels * 4, H, W)

    ref = ref_forward(x, params)
    err = float(jnp.max(jnp.abs(out - ref)))
    # bf16 matmul operands plus bf16 storage of the z1/z2 intermediates
    # (f32 accumulation, f32 BN stats) -> slightly looser tolerance than the
    # all-f32 reference.
    if not jnp.allclose(out, ref, atol=1e-1, rtol=5e-2):
        raise AssertionError(f"Pallas / reference mismatch, max abs err {err}")
    print("KERNEL_OK")
</pallas_src>

<mosaic_0001>
module attributes {stable_mosaic.version = 11 : i64} {
  func.func @_stats1_kernel(%arg0: i32, %arg1: memref<256x4xbf16, #tpu.memory_space<vmem>>, %arg2: memref<4x4xbf16, #tpu.memory_space<vmem>>, %arg3: memref<4x16xbf16, #tpu.memory_space<vmem>>, %arg4: memref<256x4xbf16, #tpu.memory_space<vmem>>, %arg5: memref<1x1x4xf32, #tpu.memory_space<vmem>>, %arg6: memref<1x1x4xf32, #tpu.memory_space<vmem>>, %arg7: memref<1x1x16xf32, #tpu.memory_space<vmem>>, %arg8: memref<1x1x16xf32, #tpu.memory_space<vmem>>) attributes {dimension_semantics = [#tpu.dimension_semantics<parallel>], iteration_bounds = array<i64: 2>, scalar_prefetch = 0 : i64, scratch_operands = 0 : i64, tpu.core_type = #tpu.core_type<tc>, window_params = [{transform_indices = @transform_0, window_bounds = array<i64: 256, 4>}, {pipeline_mode = #tpu.pipeline_mode<synchronous>, transform_indices = @transform_1, window_bounds = array<i64: 4, 4>}, {pipeline_mode = #tpu.pipeline_mode<synchronous>, transform_indices = @transform_2, window_bounds = array<i64: 4, 16>}, {transform_indices = @transform_3, window_bounds = array<i64: 256, 4>}, {transform_indices = @transform_4, window_bounds = array<i64: 1, 1, 4>}, {transform_indices = @transform_5, window_bounds = array<i64: 1, 1, 4>}, {transform_indices = @transform_6, window_bounds = array<i64: 1, 1, 16>}, {transform_indices = @transform_7, window_bounds = array<i64: 1, 1, 16>}]} {
    %c0 = arith.constant 0 : index
    %c0_0 = arith.constant 0 : index
    %0 = vector.load %arg1[%c0, %c0_0] : memref<256x4xbf16, #tpu.memory_space<vmem>>, vector<256x4xbf16>
    %c0_1 = arith.constant 0 : index
    %c0_2 = arith.constant 0 : index
    %1 = vector.load %arg2[%c0_1, %c0_2] : memref<4x4xbf16, #tpu.memory_space<vmem>>, vector<4x4xbf16>
    %cst = arith.constant dense<0.000000e+00> : vector<256x4xf32>
    %2 = tpu.matmul %0, %1, %cst {dimension_numbers = #tpu.dot_dimension_numbers<[1], [0], [0], [1], [0, 0, 1, 1], [], []>} : vector<256x4xbf16>, vector<4x4xbf16>, vector<256x4xf32> -> vector<256x4xf32>
    %c0_3 = arith.constant 0 : index
    %c0_4 = arith.constant 0 : index
    %3 = vector.load %arg3[%c0_3, %c0_4] : memref<4x16xbf16, #tpu.memory_space<vmem>>, vector<4x16xbf16>
    %cst_5 = arith.constant dense<0.000000e+00> : vector<256x16xf32>
    %4 = tpu.matmul %0, %3, %cst_5 {dimension_numbers = #tpu.dot_dimension_numbers<[1], [0], [0], [1], [0, 0, 1, 1], [], []>} : vector<256x4xbf16>, vector<4x16xbf16>, vector<256x16xf32> -> vector<256x16xf32>
    %5 = arith.truncf %2 : vector<256x4xf32> to vector<256x4xbf16>
    %c0_6 = arith.constant 0 : index
    %c0_7 = arith.constant 0 : index
    %6 = vector.load %arg4[%c0_6, %c0_7] : memref<256x4xbf16, #tpu.memory_space<vmem>>, vector<256x4xbf16>
    tpu.vector_store %arg4[%c0_6, %c0_7], %5 {strides = array<i32>} : memref<256x4xbf16, #tpu.memory_space<vmem>>, vector<256x4xbf16>,
    %cst_8 = arith.constant dense<0.000000e+00> : vector<4xf32>
    %7 = vector.multi_reduction <add>, %2, %cst_8 [0] : vector<256x4xf32> to vector<4xf32>
    %8 = vector.shape_cast %7 : vector<4xf32> to vector<1x4xf32>
    %9 = vector.shape_cast %8 : vector<1x4xf32> to vector<1x1x4xf32>
    %c0_9 = arith.constant 0 : index
    %c0_10 = arith.constant 0 : index
    %c0_11 = arith.constant 0 : index
    %10 = vector.load %arg5[%c0_9, %c0_10, %c0_11] : memref<1x1x4xf32, #tpu.memory_space<vmem>>, vector<1x1x4xf32>
    tpu.vector_store %arg5[%c0_9, %c0_10, %c0_11], %9 {strides = array<i32>} : memref<1x1x4xf32, #tpu.memory_space<vmem>>, vector<1x1x4xf32>,
    %11 = arith.mulf %2, %2 : vector<256x4xf32>
    %cst_12 = arith.constant dense<0.000000e+00> : vector<4xf32>
    %12 = vector.multi_reduction <add>, %11, %cst_12 [0] : vector<256x4xf32> to vector<4xf32>
    %13 = vector.shape_cast %12 : vector<4xf32> to vector<1x4xf32>
    %14 = vector.shape_cast %13 : vector<1x4xf32> to vector<1x1x4xf32>
    %c0_13 = arith.constant 0 : index
    %c0_14 = arith.constant 0 : index
    %c0_15 = arith.constant 0 : index
    %15 = vector.load %arg6[%c0_13, %c0_14, %c0_15] : memref<1x1x4xf32, #tpu.memory_space<vmem>>, vector<1x1x4xf32>
    tpu.vector_store %arg6[%c0_13, %c0_14, %c0_15], %14 {strides = array<i32>} : memref<1x1x4xf32, #tpu.memory_space<vmem>>, vector<1x1x4xf32>,
    %cst_16 = arith.constant dense<0.000000e+00> : vector<16xf32>
    %16 = vector.multi_reduction <add>, %4, %cst_16 [0] : vector<256x16xf32> to vector<16xf32>
    %17 = vector.shape_cast %16 : vector<16xf32> to vector<1x16xf32>
    %18 = vector.shape_cast %17 : vector<1x16xf32> to vector<1x1x16xf32>
    %c0_17 = arith.constant 0 : index
    %c0_18 = arith.constant 0 : index
    %c0_19 = arith.constant 0 : index
    %19 = vector.load %arg7[%c0_17, %c0_18, %c0_19] : memref<1x1x16xf32, #tpu.memory_space<vmem>>, vector<1x1x16xf32>
    tpu.vector_store %arg7[%c0_17, %c0_18, %c0_19], %18 {strides = array<i32>} : memref<1x1x16xf32, #tpu.memory_space<vmem>>, vector<1x1x16xf32>,
    %20 = arith.mulf %4, %4 : vector<256x16xf32>
    %cst_20 = arith.constant dense<0.000000e+00> : vector<16xf32>
    %21 = vector.multi_reduction <add>, %20, %cst_20 [0] : vector<256x16xf32> to vector<16xf32>
    %22 = vector.shape_cast %21 : vector<16xf32> to vector<1x16xf32>
    %23 = vector.shape_cast %22 : vector<1x16xf32> to vector<1x1x16xf32>
    %c0_21 = arith.constant 0 : index
    %c0_22 = arith.constant 0 : index
    %c0_23 = arith.constant 0 : index
    %24 = vector.load %arg8[%c0_21, %c0_22, %c0_23] : memref<1x1x16xf32, #tpu.memory_space<vmem>>, vector<1x1x16xf32>
    tpu.vector_store %arg8[%c0_21, %c0_22, %c0_23], %23 {strides = array<i32>} : memref<1x1x16xf32, #tpu.memory_space<vmem>>, vector<1x1x16xf32>,
    return
  }
  func.func @transform_0(%arg0: i32) -> (i32, i32) {
    %c0_i32 = arith.constant 0 : i32
    %c0_i32_0 = arith.constant 0 : i32
    return %arg0, %c0_i32 : i32, i32
  }
  func.func @transform_1(%arg0: i32) -> (i32, i32) {
    %c0_i32 = arith.constant 0 : i32
    %c0_i32_0 = arith.constant 0 : i32
    %c0_i32_1 = arith.constant 0 : i32
    return %c0_i32, %c0_i32_0 : i32, i32
  }
  func.func @transform_2(%arg0: i32) -> (i32, i32) {
    %c0_i32 = arith.constant 0 : i32
    %c0_i32_0 = arith.constant 0 : i32
    %c0_i32_1 = arith.constant 0 : i32
    return %c0_i32, %c0_i32_0 : i32, i32
  }
  func.func @transform_3(%arg0: i32) -> (i32, i32) {
    %c0_i32 = arith.constant 0 : i32
    %c0_i32_0 = arith.constant 0 : i32
    return %arg0, %c0_i32 : i32, i32
  }
  func.func @transform_4(%arg0: i32) -> (i32, i32, i32) {
    %c0_i32 = arith.constant 0 : i32
    %c0_i32_0 = arith.constant 0 : i32
    %c0_i32_1 = arith.constant 0 : i32
    return %arg0, %c0_i32, %c0_i32_0 : i32, i32, i32
  }
  func.func @transform_5(%arg0: i32) -> (i32, i32, i32) {
    %c0_i32 = arith.constant 0 : i32
    %c0_i32_0 = arith.constant 0 : i32
    %c0_i32_1 = arith.constant 0 : i32
    return %arg0, %c0_i32, %c0_i32_0 : i32, i32, i32
  }
  func.func @transform_6(%arg0: i32) -> (i32, i32, i32) {
    %c0_i32 = arith.constant 0 : i32
    %c0_i32_0 = arith.constant 0 : i32
    %c0_i32_1 = arith.constant 0 : i32
    return %arg0, %c0_i32, %c0_i32_0 : i32, i32, i32
  }
  func.func @transform_7(%arg0: i32) -> (i32, i32, i32) {
    %c0_i32 = arith.constant 0 : i32
    %c0_i32_0 = arith.constant 0 : i32
    %c0_i32_1 = arith.constant 0 : i32
    return %arg0, %c0_i32, %c0_i32_0 : i32, i32, i32
  }
}

</mosaic_0001>

<llo_original>
// kernel: tpu_custom_call.1
$region0: #{tpu_custom_call.1}
  #allocation0 [shape = 'u32[]', space=smem, size = 0x4, offset = 0x4, fixed_abs, tag = 'smem constant byte address 0x4 - core index']
  #allocation1 [shape = 'u32[144,128]{1,0:T(1,128)}', space=vmem, size = 0x12000, scoped, tag = 'internal scratch']
  %s0 = inlined_call_operand.vmem [shape: bf16[512,4], index: 0, kind: input, shape index: {}]
  %s1 = inlined_call_operand.vmem [shape: bf16[4,4], index: 1, kind: input, shape index: {}]
  %s2 = inlined_call_operand.vmem [shape: bf16[4,16], index: 2, kind: input, shape index: {}]
  %s3 = inlined_call_operand.vmem [shape: bf16[512,4], index: 3, kind: output, shape index: {0}]
  %s4 = inlined_call_operand.hbm [shape: f32[2,1,4], index: 4, kind: output, shape index: {1}]
  %s5 = inlined_call_operand.hbm [shape: f32[2,1,4], index: 5, kind: output, shape index: {2}]
  %s6 = inlined_call_operand.hbm [shape: f32[2,1,16], index: 6, kind: output, shape index: {3}]
  %s7 = inlined_call_operand.hbm [shape: f32[2,1,16], index: 7, kind: output, shape index: {4}]
  %8 = xla_tuple %s3, %s4, %s5, %s6, %s7
  %s9 = sld [smem:[#allocation0]]
  $region77: #{tpu_custom_call.1} parent=0
    _
  %s11 = ssub.s32 1, %s9
  %s12 = scalar_select 0, %s11, %s9
  $region1: #{tpu_custom_call.1} parent=0
    #allocation2 [shape = 'u8[1024]{0}', space=vmem, size = 0x400, scoped, tag = 'output window, operand 1']
    #allocation3 [shape = 's32[2]{0}', space=sflag, size = 0x8, scoped, tag = 'scoped memory for tpu_custom_call.1']
    #allocation4 [shape = 'u8[1024]{0}', space=vmem, size = 0x400, scoped, tag = 'output window, operand 2']
    #allocation5 [shape = 's32[2]{0}', space=sflag, size = 0x8, scoped, tag = 'scoped memory for tpu_custom_call.1']
    #allocation6 [shape = 'u8[1024]{0}', space=vmem, size = 0x400, scoped, tag = 'output window, operand 3']
    #allocation7 [shape = 'u8[1024]{0}', space=vmem, size = 0x400, scoped, tag = 'output window, operand 4']
    #allocation8 [shape = 's32[2]{0}', space=sflag, size = 0x8, scoped, tag = 'scoped memory for tpu_custom_call.1']
    %13 = vsyncpa [#allocation3], 0
    %s14 = scalar_lea.sflag [#allocation3], 1
    %15 = vsyncpa %s14, 0
    %16 = vsyncpa [#allocation5], 0
    %s17 = scalar_lea.sflag [#allocation5], 1
    %18 = vsyncpa %s17, 0
    %19 = vsyncpa [#allocation8], 0
    %s20 = scalar_lea.sflag [#allocation8], 1
    %21 = vsyncpa %s20, 0
    loop: start=0, step=1, limit=4
    $region2: #{tpu_custom_call.1} parent=1 // loop_pre_header
      _
    $region3: #{tpu_custom_call.1} parent=1 // loop_header
      %s23 = sphi 0, %s27
      %p24 = scmp.ge.s32.totalorder %s23, 4
      %s33 = sphi 0, %s35
      %s36 = sphi 0, %s33
      %s37 = sphi 0, %s36
      %s53 = sphi 0, %s37
      %s57 = sphi 0, %s57
      %s59 = sphi 0, %s57
      %s60 = sphi 0, %s59
      %s74 = sphi 0, %s60
      %s78 = sphi 0, %s78
      %s80 = sphi 0, %s78
      %s81 = sphi 0, %s80
      %s95 = sphi 0, %s81
      %s101 = sphi 0, %s103
      %s104 = sphi 0, %s101
      %s105 = sphi 0, %s104
      %s121 = sphi 0, %s105
      %s127 = sphi 0, %s129
      %s130 = sphi 0, %s127
      %s131 = sphi 0, %s130
      %s147 = sphi 0, %s131
      %s153 = sphi 0, %s155
      %s156 = sphi 0, %s153
      %s157 = sphi 0, %s156
      %s173 = sphi 0, %s157
      %s179 = sphi 0, %s181
      %s182 = sphi 0, %s179
      %s183 = sphi 0, %s182
      %s199 = sphi 0, %s183
      %s205 = sphi 0, %s207
      %s208 = sphi 0, %s205
      %s209 = sphi 0, %s208
      %s225 = sphi 0, %s209
    $region4: #{tpu_custom_call.1} parent=1 // loop_header_branch
      %26 = sbr.rel (%p24) target = $region8
    $region5: #{tpu_custom_call.1} parent=1 // loop_body
      %s28 = ssub.s32 %s23, 1
      %s29 = ssub.s32 %s23, 2
      %s30 = sadd.s32 %s23, 1
      %s31 = ssub.s32 %s23, %s30
      %p32 = scmp.eq.s32.totalorder %s31, 0
      %s34 = sadd.s32 %s33, 1
      %s35 = scalar_select %p32, %s33, %s34
      %p38 = pneg %p32
      %p39 = scmp.eq.s32.totalorder %s23, 1
      %p40 = por %p38, %p39
      %p41 = scmp.ne.s32.totalorder %s33, %s36
      %p42 = scmp.eq.s32.totalorder %s23, 0
      %p43 = por %p41, %p42
      %p44 = scmp.ne.s32.totalorder %s33, %s36
      %p45 = scmp.eq.s32.totalorder %s28, 1
      %p46 = por %p44, %p45
      %p47 = scmp.ne.s32.totalorder %s36, %s37
      %p48 = scmp.eq.s32.totalorder %s28, 0
      %p49 = por %p47, %p48
      %p50 = scmp.ne.s32.totalorder %s36, %s37
      %p51 = scmp.eq.s32.totalorder %s29, 1
      %p52 = por %p50, %p51
      %p54 = scmp.ne.s32.totalorder %s37, %s53
      %p55 = scmp.eq.s32.totalorder %s29, 0
      %p56 = por %p54, %p55
      %s58 = sadd.s32 %s57, 1
      %p61 = scmp.eq.s32.totalorder %s23, 1
      %p62 = scmp.ne.s32.totalorder %s57, %s59
      %p63 = scmp.eq.s32.totalorder %s23, 0
      %p64 = por %p62, %p63
      %p65 = scmp.ne.s32.totalorder %s57, %s59
      %p66 = scmp.eq.s32.totalorder %s28, 1
      %p67 = por %p65, %p66
      %p68 = scmp.ne.s32.totalorder %s59, %s60
      %p69 = scmp.eq.s32.totalorder %s28, 0
      %p70 = por %p68, %p69
      %p71 = scmp.ne.s32.totalorder %s59, %s60
      %p72 = scmp.eq.s32.totalorder %s29, 1
      %p73 = por %p71, %p72
      %p75 = scmp.ne.s32.totalorder %s60, %s74
      %p76 = scmp.eq.s32.totalorder %s29, 0
      %p77 = por %p75, %p76
      %s79 = sadd.s32 %s78, 1
      %p82 = scmp.eq.s32.totalorder %s23, 1
      %p83 = scmp.ne.s32.totalorder %s78, %s80
      %p84 = scmp.eq.s32.totalorder %s23, 0
      %p85 = por %p83, %p84
      %p86 = scmp.ne.s32.totalorder %s78, %s80
      %p87 = scmp.eq.s32.totalorder %s28, 1
      %p88 = por %p86, %p87
      %p89 = scmp.ne.s32.totalorder %s80, %s81
      %p90 = scmp.eq.s32.totalorder %s28, 0
      %p91 = por %p89, %p90
      %p92 = scmp.ne.s32.totalorder %s80, %s81
      %p93 = scmp.eq.s32.totalorder %s29, 1
      %p94 = por %p92, %p93
      %p96 = scmp.ne.s32.totalorder %s81, %s95
      %p97 = scmp.eq.s32.totalorder %s29, 0
      %p98 = por %p96, %p97
      %s99 = ssub.s32 %s23, %s30
      %p100 = scmp.eq.s32.totalorder %s99, 0
      %s102 = sadd.s32 %s101, 1
      %s103 = scalar_select %p100, %s101, %s102
      %p106 = pneg %p100
      %p107 = scmp.eq.s32.totalorder %s23, 1
      %p108 = por %p106, %p107
      %p109 = scmp.ne.s32.totalorder %s101, %s104
      %p110 = scmp.eq.s32.totalorder %s23, 0
      %p111 = por %p109, %p110
      %p112 = scmp.ne.s32.totalorder %s101, %s104
      %p113 = scmp.eq.s32.totalorder %s28, 1
      %p114 = por %p112, %p113
      %p115 = scmp.ne.s32.totalorder %s104, %s105
      %p116 = scmp.eq.s32.totalorder %s28, 0
      %p117 = por %p115, %p116
      %p118 = scmp.ne.s32.totalorder %s104, %s105
      %p119 = scmp.eq.s32.totalorder %s29, 1
      %p120 = por %p118, %p119
      %p122 = scmp.ne.s32.totalorder %s105, %s121
      %p123 = scmp.eq.s32.totalorder %s29, 0
      %p124 = por %p122, %p123
      %s125 = ssub.s32 %s23, %s30
      %p126 = scmp.eq.s32.totalorder %s125, 0
      %s128 = sadd.s32 %s127, 1
      %s129 = scalar_select %p126, %s127, %s128
      %p132 = pneg %p126
      %p133 = scmp.eq.s32.totalorder %s23, 1
      %p134 = por %p132, %p133
      %p135 = scmp.ne.s32.totalorder %s127, %s130
      %p136 = scmp.eq.s32.totalorder %s23, 0
      %p137 = por %p135, %p136
      %p138 = scmp.ne.s32.totalorder %s127, %s130
      %p139 = scmp.eq.s32.totalorder %s28, 1
      %p140 = por %p138, %p139
      %p141 = scmp.ne.s32.totalorder %s130, %s131
      %p142 = scmp.eq.s32.totalorder %s28, 0
      %p143 = por %p141, %p142
      %p144 = scmp.ne.s32.totalorder %s130, %s131
      %p145 = scmp.eq.s32.totalorder %s29, 1
      %p146 = por %p144, %p145
      %p148 = scmp.ne.s32.totalorder %s131, %s147
      %p149 = scmp.eq.s32.totalorder %s29, 0
      %p150 = por %p148, %p149
      %s151 = ssub.s32 %s23, %s30
      %p152 = scmp.eq.s32.totalorder %s151, 0
      %s154 = sadd.s32 %s153, 1
      %s155 = scalar_select %p152, %s153, %s154
      %p158 = pneg %p152
      %p159 = scmp.eq.s32.totalorder %s23, 1
      %p160 = por %p158, %p159
      %p161 = scmp.ne.s32.totalorder %s153, %s156
      %p162 = scmp.eq.s32.totalorder %s23, 0
      %p163 = por %p161, %p162
      %p164 = scmp.ne.s32.totalorder %s153, %s156
      %p165 = scmp.eq.s32.totalorder %s28, 1
      %p166 = por %p164, %p165
      %p167 = scmp.ne.s32.totalorder %s156, %s157
      %p168 = scmp.eq.s32.totalorder %s28, 0
      %p169 = por %p167, %p168
      %p170 = scmp.ne.s32.totalorder %s156, %s157
      %p171 = scmp.eq.s32.totalorder %s29, 1
      %p172 = por %p170, %p171
      %p174 = scmp.ne.s32.totalorder %s157, %s173
      %p175 = scmp.eq.s32.totalorder %s29, 0
      %p176 = por %p174, %p175
      %s177 = ssub.s32 %s23, %s30
      %p178 = scmp.eq.s32.totalorder %s177, 0
      %s180 = sadd.s32 %s179, 1
      %s181 = scalar_select %p178, %s179, %s180
      %p184 = pneg %p178
      %p185 = scmp.eq.s32.totalorder %s23, 1
      %p186 = por %p184, %p185
      %p187 = scmp.ne.s32.totalorder %s179, %s182
      %p188 = scmp.eq.s32.totalorder %s23, 0
      %p189 = por %p187, %p188
      %p190 = scmp.ne.s32.totalorder %s179, %s182
      %p191 = scmp.eq.s32.totalorder %s28, 1
      %p192 = por %p190, %p191
      %p193 = scmp.ne.s32.totalorder %s182, %s183
      %p194 = scmp.eq.s32.totalorder %s28, 0
      %p195 = por %p193, %p194
      %p196 = scmp.ne.s32.totalorder %s182, %s183
      %p197 = scmp.eq.s32.totalorder %s29, 1
      %p198 = por %p196, %p197
      %p200 = scmp.ne.s32.totalorder %s183, %s199
      %p201 = scmp.eq.s32.totalorder %s29, 0
      %p202 = por %p200, %p201
      %s203 = ssub.s32 %s23, %s30
      %p204 = scmp.eq.s32.totalorder %s203, 0
      %s206 = sadd.s32 %s205, 1
      %s207 = scalar_select %p204, %s205, %s206
      %p210 = pneg %p204
      %p211 = scmp.eq.s32.totalorder %s23, 1
      %p212 = por %p210, %p211
      %p213 = scmp.ne.s32.totalorder %s205, %s208
      %p214 = scmp.eq.s32.totalorder %s23, 0
      %p215 = por %p213, %p214
      %p216 = scmp.ne.s32.totalorder %s205, %s208
      %p217 = scmp.eq.s32.totalorder %s28, 1
      %p218 = por %p216, %p217
      %p219 = scmp.ne.s32.totalorder %s208, %s209
      %p220 = scmp.eq.s32.totalorder %s28, 0
      %p221 = por %p219, %p220
      %p222 = scmp.ne.s32.totalorder %s208, %s209
      %p223 = scmp.eq.s32.totalorder %s29, 1
      %p224 = por %p222, %p223
      %p226 = scmp.ne.s32.totalorder %s209, %s225
      %p227 = scmp.eq.s32.totalorder %s29, 0
      %p228 = por %p226, %p227
      %p229 = scmp.le.s32.totalorder 1, %s23
      %p230 = scmp.lt.s32.totalorder %s23, 3
      %p231 = pnand %p229, %p230
      %p232 = pneg %p231
      // Predicated region
      $region9: #{tpu_custom_call.1} parent=5 // pred_check
        _
      $region10: #{tpu_custom_call.1} parent=5 // pred_check_branch
        %234 = sbr.rel (%p231) target = $region12
      $region11: #{tpu_custom_call.1} parent=5 // pred_region
        %s235 = ssub.s32 %s23, 1
        // Predicated region
        $region13: #{tpu_custom_call.1} parent=11 // pred_check
          %p236 = pneg %p70
        $region14: #{tpu_custom_call.1} parent=11 // pred_check_branch
          %238 = sbr.rel (%p236) target = $region16
        $region15: #{tpu_custom_call.1} parent=11 // pred_region
          _
        $region16: #{tpu_custom_call.1} parent=11 // pred_fallthru
          _
        // Predicated region
        $region17: #{tpu_custom_call.1} parent=11 // pred_check
          %p239 = pneg %p91
        $region18: #{tpu_custom_call.1} parent=11 // pred_check_branch
          %241 = sbr.rel (%p239) target = $region20
        $region19: #{tpu_custom_call.1} parent=11 // pred_region
          _
        $region20: #{tpu_custom_call.1} parent=11 // pred_fallthru
          _
      $region12: #{tpu_custom_call.1} parent=5 // pred_fallthru
        _
      %p242 = scmp.lt.s32.totalorder %s23, 2
      // Predicated region
      $region21: #{tpu_custom_call.1} parent=5 // pred_check
        %p243 = pneg %p242
      $region22: #{tpu_custom_call.1} parent=5 // pred_check_branch
        %245 = sbr.rel (%p243) target = $region24
      $region23: #{tpu_custom_call.1} parent=5 // pred_region
        // Predicated region
        $region25: #{tpu_custom_call.1} parent=23 // pred_check
          %p246 = pneg %p43
        $region26: #{tpu_custom_call.1} parent=23 // pred_check_branch
          %248 = sbr.rel (%p246) target = $region28
        $region27: #{tpu_custom_call.1} parent=23 // pred_region
          %s249 = smul.u32 32, %s23
          %p250 = scmp.lt.s32.totalorder %s249, 63
          %s251 = scalar_select %p250, %s249, 63
          %s252 = smul.addr %s251, 4
          %s253 = scalar_lea.vmem %s0, %s252
          %s254 = smul.u32 32, %s23
        $region28: #{tpu_custom_call.1} parent=23 // pred_fallthru
          _
      $region24: #{tpu_custom_call.1} parent=5 // pred_fallthru
        _
      %p255 = scmp.le.s32.totalorder 1, %s23
      %p256 = scmp.lt.s32.totalorder %s23, 3
      %p257 = pnand %p255, %p256
      %p258 = pneg %p257
      // Predicated region
      $region29: #{tpu_custom_call.1} parent=5 // pred_check
        _
      $region30: #{tpu_custom_call.1} parent=5 // pred_check_branch
        %260 = sbr.rel (%p257) target = $region32
      $region31: #{tpu_custom_call.1} parent=5 // pred_region
        %s261 = ssub.s32 %s23, 1
        %s262 = smul.u32 32, %s28
        %p263 = scmp.lt.s32.totalorder %s262, 63
        %s264 = scalar_select %p263, %s262, 63
        %s265 = smul.addr %s264, 4
        %s266 = scalar_lea.vmem %s0, %s265
        %p267 = pneg %p49
        %p268 = pneg %p46
        %p269 = pneg %p70
        %p270 = pneg %p67
        %p271 = pneg %p91
        %p272 = pneg %p88
        %p273 = pneg %p117
        %p274 = pneg %p114
        %s275 = smul.u32 32, %s28
        %p276 = scmp.lt.s32.totalorder %s275, 63
        %s277 = scalar_select %p276, %s275, 63
        %s278 = smul.addr %s277, 4
        %s279 = scalar_lea.vmem %s3, %s278
        %p280 = pneg %p143
        %p281 = pneg %p140
        %s282 = sand.u32 %s130, 1
        %s283 = scalar_lea.sflag [#allocation3], %s282
        %s284 = sand.u32 %s130, 1
        %s285 = scalar_lea.vmem [#allocation2], %s284
        %p286 = pneg %p169
        %p287 = pneg %p166
        %s288 = sand.u32 %s28, 1
        %s289 = scalar_lea.sflag [#allocation5], %s288
        %s290 = sand.u32 %s156, 1
        %s291 = scalar_lea.vmem [#allocation4], %s290
        %p292 = pneg %p195
        %p293 = pneg %p192
        %s294 = sand.u32 %s28, 1
        %s295 = scalar_lea.sflag [#allocation5], %s294
        %s296 = sand.u32 %s182, 1
        %s297 = scalar_lea.vmem [#allocation6], %s296
        %p298 = pneg %p221
        %p299 = pneg %p218
        %s300 = sand.u32 %s208, 1
        %s301 = scalar_lea.sflag [#allocation8], %s300
        %s302 = sand.u32 %s208, 1
        %s303 = scalar_lea.vmem [#allocation7], %s302
        %s304 = smul.u32 32, %s28
        %p305 = scmp.lt.s32.totalorder %s304, 63
        %s306 = scalar_select %p305, %s304, 63
        %s307 = smul.addr %s306, 4
        %s308 = scalar_lea.vmem %s0, %s307
        %s309 = smul.u32 32, %s28
        %s310 = smul.u32 32, %s28
        %p311 = scmp.lt.s32.totalorder %s310, 63
        %s312 = scalar_select %p311, %s310, 63
        %s313 = smul.addr %s312, 4
        %s314 = scalar_lea.vmem %s3, %s313
        %s315 = smul.u32 32, %s28
        %v317 = vld [vmem:[%s308] sm:$0xf]
        %v318 = vld [vmem:[%s308 + $0x4] sm:$0xf]
        %v319 = vld [vmem:[%s308 + $0x8] sm:$0xf]
        %v320 = vld [vmem:[%s308 + $0xc] sm:$0xf]
        %v321 = vld [vmem:[%s308 + $0x10] sm:$0xf]
        %v322 = vld [vmem:[%s308 + $0x14] sm:$0xf]
        %v323 = vld [vmem:[%s308 + $0x18] sm:$0xf]
        %v324 = vld [vmem:[%s308 + $0x1c] sm:$0xf]
        %v325 = vld [vmem:[%s308 + $0x20] sm:$0xf]
        %v326 = vld [vmem:[%s308 + $0x24] sm:$0xf]
        %v327 = vld [vmem:[%s308 + $0x28] sm:$0xf]
        %v328 = vld [vmem:[%s308 + $0x2c] sm:$0xf]
        %v329 = vld [vmem:[%s308 + $0x30] sm:$0xf]
        %v330 = vld [vmem:[%s308 + $0x34] sm:$0xf]
        %v331 = vld [vmem:[%s308 + $0x38] sm:$0xf]
        %v332 = vld [vmem:[%s308 + $0x3c] sm:$0xf]
        %v333 = vld [vmem:[%s308 + $0x40] sm:$0xf]
        %v334 = vld [vmem:[%s308 + $0x44] sm:$0xf]
        %v335 = vld [vmem:[%s308 + $0x48] sm:$0xf]
        %v336 = vld [vmem:[%s308 + $0x4c] sm:$0xf]
        %v337 = vld [vmem:[%s308 + $0x50] sm:$0xf]
        %v338 = vld [vmem:[%s308 + $0x54] sm:$0xf]
        %v339 = vld [vmem:[%s308 + $0x58] sm:$0xf]
        %v340 = vld [vmem:[%s308 + $0x5c] sm:$0xf]
        %v341 = vld [vmem:[%s308 + $0x60] sm:$0xf]
        %v342 = vld [vmem:[%s308 + $0x64] sm:$0xf]
        %v343 = vld [vmem:[%s308 + $0x68] sm:$0xf]
        %v344 = vld [vmem:[%s308 + $0x6c] sm:$0xf]
        %v345 = vld [vmem:[%s308 + $0x70] sm:$0xf]
        %v346 = vld [vmem:[%s308 + $0x74] sm:$0xf]
        %v347 = vld [vmem:[%s308 + $0x78] sm:$0xf]
        %v348 = vld [vmem:[%s308 + $0x7c] sm:$0xf]
        %v349 = vld [vmem:[%s1] sm:$0x3]
        %v382 = vunpack.c.l.b16 %v317
        %v383 = vunpack.c.l.b16 %v318
        %v384 = vunpack.c.l.b16 %v319
        %v385 = vunpack.c.l.b16 %v320
        %v386 = vunpack.c.l.b16 %v321
        %v387 = vunpack.c.l.b16 %v322
        %v388 = vunpack.c.l.b16 %v323
        %v389 = vunpack.c.l.b16 %v324
        %v390 = vunpack.c.l.b16 %v325
        %v391 = vunpack.c.l.b16 %v326
        %v392 = vunpack.c.l.b16 %v327
        %v393 = vunpack.c.l.b16 %v328
        %v394 = vunpack.c.l.b16 %v329
        %v395 = vunpack.c.l.b16 %v330
        %v396 = vunpack.c.l.b16 %v331
        %v397 = vunpack.c.l.b16 %v332
        %v398 = vunpack.c.l.b16 %v333
        %v399 = vunpack.c.l.b16 %v334
        %v400 = vunpack.c.l.b16 %v335
        %v401 = vunpack.c.l.b16 %v336
        %v402 = vunpack.c.l.b16 %v337
        %v403 = vunpack.c.l.b16 %v338
        %v404 = vunpack.c.l.b16 %v339
        %v405 = vunpack.c.l.b16 %v340
        %v406 = vunpack.c.l.b16 %v341
        %v407 = vunpack.c.l.b16 %v342
        %v408 = vunpack.c.l.b16 %v343
        %v409 = vunpack.c.l.b16 %v344
        %v410 = vunpack.c.l.b16 %v345
        %v411 = vunpack.c.l.b16 %v346
        %v412 = vunpack.c.l.b16 %v347
        %v413 = vunpack.c.l.b16 %v348
        %v414 = vpack.c.b16 %v383, %v382
        %v415 = vpack.c.b16 %v385, %v384
        %v416 = vpack.c.b16 %v387, %v386
        %v417 = vpack.c.b16 %v389, %v388
        %v418 = vpack.c.b16 %v391, %v390
        %v419 = vpack.c.b16 %v393, %v392
        %v420 = vpack.c.b16 %v395, %v394
        %v421 = vpack.c.b16 %v397, %v396
        %v422 = vpack.c.b16 %v399, %v398
        %v423 = vpack.c.b16 %v401, %v400
        %v424 = vpack.c.b16 %v403, %v402
        %v425 = vpack.c.b16 %v405, %v404
        %v426 = vpack.c.b16 %v407, %v406
        %v427 = vpack.c.b16 %v409, %v408
        %v428 = vpack.c.b16 %v411, %v410
        %v429 = vpack.c.b16 %v413, %v412
        %vm430 = vcmask 31744
        %v432 = vsel %vm430, %v414, 0
        %v435 = vsel %vm430, %v415, 0
        %v438 = vsel %vm430, %v416, 0
        %v441 = vsel %vm430, %v417, 0
        %v444 = vsel %vm430, %v418, 0
        %v447 = vsel %vm430, %v419, 0
        %v450 = vsel %vm430, %v420, 0
        %v453 = vsel %vm430, %v421, 0
        %v456 = vsel %vm430, %v422, 0
        %v459 = vsel %vm430, %v423, 0
        %v462 = vsel %vm430, %v424, 0
        %v465 = vsel %vm430, %v425, 0
        %v468 = vsel %vm430, %v426, 0
        %v471 = vsel %vm430, %v427, 0
        %v474 = vsel %vm430, %v428, 0
        %v477 = vsel %vm430, %v429, 0
        %vm479 = vcmask 1041408
        %v481 = vsel %vm479, %v349, 0
        %483 = vmatprep.subr.bf16.mxu0 0
        %484 = vmatpush1.bf16.msra.mxu0 %v481
        %485 = vmatprep.subr.bf16.mxu0 0
        %486 = vmatpush1.bf16.msra.mxu0 0
        %487 = vmatprep.subr.bf16.mxu0 0
        %488 = vmatpush1.bf16.msra.mxu0 0
        %489 = vmatprep.subr.bf16.mxu0 0
        %490 = vmatpush1.bf16.msra.mxu0 0
        %491 = vmatprep.subr.bf16.mxu0 0
        %492 = vmatpush1.bf16.msra.mxu0 0
        %493 = vmatprep.subr.bf16.mxu0 0
        %494 = vmatpush1.bf16.msra.mxu0 0
        %495 = vmatprep.subr.bf16.mxu0 0
        %496 = vmatpush1.bf16.msra.mxu0 0
        %497 = vmatprep.subr.bf16.mxu0 0
        %498 = vmatpush1.bf16.msra.mxu0 0
        %499 = vmatprep.subr.bf16.mxu0 0
        %500 = vmatpush1.bf16.msra.mxu0 0
        %501 = vmatprep.subr.bf16.mxu0 0
        %502 = vmatpush1.bf16.msra.mxu0 0
        %503 = vmatprep.subr.bf16.mxu0 0
        %504 = vmatpush1.bf16.msra.mxu0 0
        %505 = vmatprep.subr.bf16.mxu0 0
        %506 = vmatpush1.bf16.msra.mxu0 0
        %507 = vmatprep.subr.bf16.mxu0 0
        %508 = vmatpush1.bf16.msra.mxu0 0
        %509 = vmatprep.subr.bf16.mxu0 0
        %510 = vmatpush1.bf16.msra.mxu0 0
        %511 = vmatprep.subr.bf16.mxu0 0
        %512 = vmatpush1.bf16.msra.mxu0 0
        %513 = vmatprep.subr.bf16.mxu0 0
        %514 = vmatpush1.bf16.msra.mxu0 0
        %515 = vmatprep.mubr.bf16.mxu0 0
        %516 = vmatmul.mubr.bf16.gmra.mrb[0].mxu0 %v432
        %v517 = vpop.f32.mrb[0].mxu0
        %v518 = vadd.f32 0.0, %v517
        %v519 = vpop.f32.mrb[0].mxu0
        %v520 = vpop.f32.mrb[0].mxu0
        %v521 = vadd.f32 0.0, %v520
        %v522 = vpop.f32.mrb[0].mxu0
        %523 = vmatprep.mubr.bf16.mxu0 0
        %524 = vmatmul.mubr.bf16.gmra.mrb[0].mxu0 %v435
        %v525 = vpop.f32.mrb[0].mxu0
        %v526 = vadd.f32 0.0, %v525
        %v527 = vpop.f32.mrb[0].mxu0
        %v528 = vpop.f32.mrb[0].mxu0
        %v529 = vadd.f32 0.0, %v528
        %v530 = vpop.f32.mrb[0].mxu0
        %531 = vmatprep.mubr.bf16.mxu0 0
        %532 = vmatmul.mubr.bf16.gmra.mrb[0].mxu0 %v438
        %v533 = vpop.f32.mrb[0].mxu0
        %v534 = vadd.f32 0.0, %v533
        %v535 = vpop.f32.mrb[0].mxu0
        %v536 = vpop.f32.mrb[0].mxu0
        %v537 = vadd.f32 0.0, %v536
        %v538 = vpop.f32.mrb[0].mxu0
        %539 = vmatprep.mubr.bf16.mxu0 0
        %540 = vmatmul.mubr.bf16.gmra.mrb[0].mxu0 %v441
        %v541 = vpop.f32.mrb[0].mxu0
        %v542 = vadd.f32 0.0, %v541
        %v543 = vpop.f32.mrb[0].mxu0
        %v544 = vpop.f32.mrb[0].mxu0
        %v545 = vadd.f32 0.0, %v544
        %v546 = vpop.f32.mrb[0].mxu0
        %547 = vmatprep.mubr.bf16.mxu0 0
        %548 = vmatmul.mubr.bf16.gmra.mrb[0].mxu0 %v444
        %v549 = vpop.f32.mrb[0].mxu0
        %v550 = vadd.f32 0.0, %v549
        %v551 = vpop.f32.mrb[0].mxu0
        %v552 = vpop.f32.mrb[0].mxu0
        %v553 = vadd.f32 0.0, %v552
        %v554 = vpop.f32.mrb[0].mxu0
        %555 = vmatprep.mubr.bf16.mxu0 0
        %556 = vmatmul.mubr.bf16.gmra.mrb[0].mxu0 %v447
        %v557 = vpop.f32.mrb[0].mxu0
        %v558 = vadd.f32 0.0, %v557
        %v559 = vpop.f32.mrb[0].mxu0
        %v560 = vpop.f32.mrb[0].mxu0
        %v561 = vadd.f32 0.0, %v560
        %v562 = vpop.f32.mrb[0].mxu0
        %563 = vmatprep.mubr.bf16.mxu0 0
        %564 = vmatmul.mubr.bf16.gmra.mrb[0].mxu0 %v450
        %v565 = vpop.f32.mrb[0].mxu0
        %v566 = vadd.f32 0.0, %v565
        %v567 = vpop.f32.mrb[0].mxu0
        %v568 = vpop.f32.mrb[0].mxu0
        %v569 = vadd.f32 0.0, %v568
        %v570 = vpop.f32.mrb[0].mxu0
        %571 = vmatprep.mubr.bf16.mxu0 0
        %572 = vmatmul.mubr.bf16.gmra.mrb[0].mxu0 %v453
        %v573 = vpop.f32.mrb[0].mxu0
        %v574 = vadd.f32 0.0, %v573
        %v575 = vpop.f32.mrb[0].mxu0
        %v576 = vpop.f32.mrb[0].mxu0
        %v577 = vadd.f32 0.0, %v576
        %v578 = vpop.f32.mrb[0].mxu0
        %579 = vmatprep.mubr.bf16.mxu0 0
        %580 = vmatmul.mubr.bf16.gmra.mrb[0].mxu0 %v456
        %v581 = vpop.f32.mrb[0].mxu0
        %v582 = vadd.f32 0.0, %v581
        %v583 = vpop.f32.mrb[0].mxu0
        %v584 = vpop.f32.mrb[0].mxu0
        %v585 = vadd.f32 0.0, %v584
        %v586 = vpop.f32.mrb[0].mxu0
        %587 = vmatprep.mubr.bf16.mxu0 0
        %588 = vmatmul.mubr.bf16.gmra.mrb[0].mxu0 %v459
        %v589 = vpop.f32.mrb[0].mxu0
        %v590 = vadd.f32 0.0, %v589
        %v591 = vpop.f32.mrb[0].mxu0
        %v592 = vpop.f32.mrb[0].mxu0
        %v593 = vadd.f32 0.0, %v592
        %v594 = vpop.f32.mrb[0].mxu0
        %595 = vmatprep.mubr.bf16.mxu0 0
        %596 = vmatmul.mubr.bf16.gmra.mrb[0].mxu0 %v462
        %v597 = vpop.f32.mrb[0].mxu0
        %v598 = vadd.f32 0.0, %v597
        %v599 = vpop.f32.mrb[0].mxu0
        %v600 = vpop.f32.mrb[0].mxu0
        %v601 = vadd.f32 0.0, %v600
        %v602 = vpop.f32.mrb[0].mxu0
        %603 = vmatprep.mubr.bf16.mxu0 0
        %604 = vmatmul.mubr.bf16.gmra.mrb[0].mxu0 %v465
        %v605 = vpop.f32.mrb[0].mxu0
        %v606 = vadd.f32 0.0, %v605
        %v607 = vpop.f32.mrb[0].mxu0
        %v608 = vpop.f32.mrb[0].mxu0
        %v609 = vadd.f32 0.0, %v608
        %v610 = vpop.f32.mrb[0].mxu0
        %611 = vmatprep.mubr.bf16.mxu0 0
        %612 = vmatmul.mubr.bf16.gmra.mrb[0].mxu0 %v468
        %v613 = vpop.f32.mrb[0].mxu0
        %v614 = vadd.f32 0.0, %v613
        %v615 = vpop.f32.mrb[0].mxu0
        %v616 = vpop.f32.mrb[0].mxu0
        %v617 = vadd.f32 0.0, %v616
        %v618 = vpop.f32.mrb[0].mxu0
        %619 = vmatprep.mubr.bf16.mxu0 0
        %620 = vmatmul.mubr.bf16.gmra.mrb[0].mxu0 %v471
        %v621 = vpop.f32.mrb[0].mxu0
        %v622 = vadd.f32 0.0, %v621
        %v623 = vpop.f32.mrb[0].mxu0
        %v624 = vpop.f32.mrb[0].mxu0
        %v625 = vadd.f32 0.0, %v624
        %v626 = vpop.f32.mrb[0].mxu0
        %627 = vmatprep.mubr.bf16.mxu0 0
        %628 = vmatmul.mubr.bf16.gmra.mrb[0].mxu0 %v474
        %v629 = vpop.f32.mrb[0].mxu0
        %v630 = vadd.f32 0.0, %v629
        %v631 = vpop.f32.mrb[0].mxu0
        %v632 = vpop.f32.mrb[0].mxu0
        %v633 = vadd.f32 0.0, %v632
        %v634 = vpop.f32.mrb[0].mxu0
        %635 = vmatprep.mubr.bf16.mxu0 0
        %636 = vmatmul.mubr.bf16.gmra.mrb[0].mxu0 %v477
        %v637 = vpop.f32.mrb[0].mxu0
        %v638 = vadd.f32 0.0, %v637
        %v639 = vpop.f32.mrb[0].mxu0
        %v640 = vpop.f32.mrb[0].mxu0
        %v641 = vadd.f32 0.0, %v640
        %v642 = vpop.f32.mrb[0].mxu0
        %643 = vdwg.mxu0
        %v644 = vld [vmem:[%s2] sm:$0x3]
        %v646 = vsel %vm479, %v644, 0
        %648 = vmatprep.subr.bf16.mxu0 0
        %649 = vmatpush1.bf16.msra.mxu0 %v646
        %650 = vmatprep.subr.bf16.mxu0 0
        %651 = vmatpush1.bf16.msra.mxu0 0
        %652 = vmatprep.subr.bf16.mxu0 0
        %653 = vmatpush1.bf16.msra.mxu0 0
        %654 = vmatprep.subr.bf16.mxu0 0
        %655 = vmatpush1.bf16.msra.mxu0 0
        %656 = vmatprep.subr.bf16.mxu0 0
        %657 = vmatpush1.bf16.msra.mxu0 0
        %658 = vmatprep.subr.bf16.mxu0 0
        %659 = vmatpush1.bf16.msra.mxu0 0
        %660 = vmatprep.subr.bf16.mxu0 0
        %661 = vmatpush1.bf16.msra.mxu0 0
        %662 = vmatprep.subr.bf16.mxu0 0
        %663 = vmatpush1.bf16.msra.mxu0 0
        %664 = vmatprep.subr.bf16.mxu0 0
        %665 = vmatpush1.bf16.msra.mxu0 0
        %666 = vmatprep.subr.bf16.mxu0 0
        %667 = vmatpush1.bf16.msra.mxu0 0
        %668 = vmatprep.subr.bf16.mxu0 0
        %669 = vmatpush1.bf16.msra.mxu0 0
        %670 = vmatprep.subr.bf16.mxu0 0
        %671 = vmatpush1.bf16.msra.mxu0 0
        %672 = vmatprep.subr.bf16.mxu0 0
        %673 = vmatpush1.bf16.msra.mxu0 0
        %674 = vmatprep.subr.bf16.mxu0 0
        %675 = vmatpush1.bf16.msra.mxu0 0
        %676 = vmatprep.subr.bf16.mxu0 0
        %677 = vmatpush1.bf16.msra.mxu0 0
        %678 = vmatprep.subr.bf16.mxu0 0
        %679 = vmatpush1.bf16.msra.mxu0 0
        %680 = vmatprep.mubr.bf16.mxu0 0
        %681 = vmatmul.mubr.bf16.gmra.mrb[0].mxu0 %v432
        %v682 = vpop.f32.mrb[0].mxu0
        %v683 = vadd.f32 0.0, %v682
        %v684 = vpop.f32.mrb[0].mxu0
        %v685 = vpop.f32.mrb[0].mxu0
        %v686 = vadd.f32 0.0, %v685
        %v687 = vpop.f32.mrb[0].mxu0
        %688 = vmatprep.mubr.bf16.mxu0 0
        %689 = vmatmul.mubr.bf16.gmra.mrb[0].mxu0 %v435
        %v690 = vpop.f32.mrb[0].mxu0
        %v691 = vadd.f32 0.0, %v690
        %v692 = vpop.f32.mrb[0].mxu0
        %v693 = vpop.f32.mrb[0].mxu0
        %v694 = vadd.f32 0.0, %v693
        %v695 = vpop.f32.mrb[0].mxu0
        %696 = vmatprep.mubr.bf16.mxu0 0
        %697 = vmatmul.mubr.bf16.gmra.mrb[0].mxu0 %v438
        %v698 = vpop.f32.mrb[0].mxu0
        %v699 = vadd.f32 0.0, %v698
        %v700 = vpop.f32.mrb[0].mxu0
        %v701 = vpop.f32.mrb[0].mxu0
        %v702 = vadd.f32 0.0, %v701
        %v703 = vpop.f32.mrb[0].mxu0
        %704 = vmatprep.mubr.bf16.mxu0 0
        %705 = vmatmul.mubr.bf16.gmra.mrb[0].mxu0 %v441
        %v706 = vpop.f32.mrb[0].mxu0
        %v707 = vadd.f32 0.0, %v706
        %v708 = vpop.f32.mrb[0].mxu0
        %v709 = vpop.f32.mrb[0].mxu0
        %v710 = vadd.f32 0.0, %v709
        %v711 = vpop.f32.mrb[0].mxu0
        %712 = vmatprep.mubr.bf16.mxu0 0
        %713 = vmatmul.mubr.bf16.gmra.mrb[0].mxu0 %v444
        %v714 = vpop.f32.mrb[0].mxu0
        %v715 = vadd.f32 0.0, %v714
        %v716 = vpop.f32.mrb[0].mxu0
        %v717 = vpop.f32.mrb[0].mxu0
        %v718 = vadd.f32 0.0, %v717
        %v719 = vpop.f32.mrb[0].mxu0
        %720 = vmatprep.mubr.bf16.mxu0 0
        %721 = vmatmul.mubr.bf16.gmra.mrb[0].mxu0 %v447
        %v722 = vpop.f32.mrb[0].mxu0
        %v723 = vadd.f32 0.0, %v722
        %v724 = vpop.f32.mrb[0].mxu0
        %v725 = vpop.f32.mrb[0].mxu0
        %v726 = vadd.f32 0.0, %v725
        %v727 = vpop.f32.mrb[0].mxu0
        %728 = vmatprep.mubr.bf16.mxu0 0
        %729 = vmatmul.mubr.bf16.gmra.mrb[0].mxu0 %v450
        %v730 = vpop.f32.mrb[0].mxu0
        %v731 = vadd.f32 0.0, %v730
        %v732 = vpop.f32.mrb[0].mxu0
        %v733 = vpop.f32.mrb[0].mxu0
        %v734 = vadd.f32 0.0, %v733
        %v735 = vpop.f32.mrb[0].mxu0
        %736 = vmatprep.mubr.bf16.mxu0 0
        %737 = vmatmul.mubr.bf16.gmra.mrb[0].mxu0 %v453
        %v738 = vpop.f32.mrb[0].mxu0
        %v739 = vadd.f32 0.0, %v738
        %v740 = vpop.f32.mrb[0].mxu0
        %v741 = vpop.f32.mrb[0].mxu0
        %v742 = vadd.f32 0.0, %v741
        %v743 = vpop.f32.mrb[0].mxu0
        %744 = vmatprep.mubr.bf16.mxu0 0
        %745 = vmatmul.mubr.bf16.gmra.mrb[0].mxu0 %v456
        %v746 = vpop.f32.mrb[0].mxu0
        %v747 = vadd.f32 0.0, %v746
        %v748 = vpop.f32.mrb[0].mxu0
        %v749 = vpop.f32.mrb[0].mxu0
        %v750 = vadd.f32 0.0, %v749
        %v751 = vpop.f32.mrb[0].mxu0
        %752 = vmatprep.mubr.bf16.mxu0 0
        %753 = vmatmul.mubr.bf16.gmra.mrb[0].mxu0 %v459
        %v754 = vpop.f32.mrb[0].mxu0
        %v755 = vadd.f32 0.0, %v754
        %v756 = vpop.f32.mrb[0].mxu0
        %v757 = vpop.f32.mrb[0].mxu0
        %v758 = vadd.f32 0.0, %v757
        %v759 = vpop.f32.mrb[0].mxu0
        %760 = vmatprep.mubr.bf16.mxu0 0
        %761 = vmatmul.mubr.bf16.gmra.mrb[0].mxu0 %v462
        %v762 = vpop.f32.mrb[0].mxu0
        %v763 = vadd.f32 0.0, %v762
        %v764 = vpop.f32.mrb[0].mxu0
        %v765 = vpop.f32.mrb[0].mxu0
        %v766 = vadd.f32 0.0, %v765
        %v767 = vpop.f32.mrb[0].mxu0
        %768 = vmatprep.mubr.bf16.mxu0 0
        %769 = vmatmul.mubr.bf16.gmra.mrb[0].mxu0 %v465
        %v770 = vpop.f32.mrb[0].mxu0
        %v771 = vadd.f32 0.0, %v770
        %v772 = vpop.f32.mrb[0].mxu0
        %v773 = vpop.f32.mrb[0].mxu0
        %v774 = vadd.f32 0.0, %v773
        %v775 = vpop.f32.mrb[0].mxu0
        %776 = vmatprep.mubr.bf16.mxu0 0
        %777 = vmatmul.mubr.bf16.gmra.mrb[0].mxu0 %v468
        %v778 = vpop.f32.mrb[0].mxu0
        %v779 = vadd.f32 0.0, %v778
        %v780 = vpop.f32.mrb[0].mxu0
        %v781 = vpop.f32.mrb[0].mxu0
        %v782 = vadd.f32 0.0, %v781
        %v783 = vpop.f32.mrb[0].mxu0
        %784 = vmatprep.mubr.bf16.mxu0 0
        %785 = vmatmul.mubr.bf16.gmra.mrb[0].mxu0 %v471
        %v786 = vpop.f32.mrb[0].mxu0
        %v787 = vadd.f32 0.0, %v786
        %v788 = vpop.f32.mrb[0].mxu0
        %v789 = vpop.f32.mrb[0].mxu0
        %v790 = vadd.f32 0.0, %v789
        %v791 = vpop.f32.mrb[0].mxu0
        %792 = vmatprep.mubr.bf16.mxu0 0
        %793 = vmatmul.mubr.bf16.gmra.mrb[0].mxu0 %v474
        %v794 = vpop.f32.mrb[0].mxu0
        %v795 = vadd.f32 0.0, %v794
        %v796 = vpop.f32.mrb[0].mxu0
        %v797 = vpop.f32.mrb[0].mxu0
        %v798 = vadd.f32 0.0, %v797
        %v799 = vpop.f32.mrb[0].mxu0
        %800 = vmatprep.mubr.bf16.mxu0 0
        %801 = vmatmul.mubr.bf16.gmra.mrb[0].mxu0 %v477
        %v802 = vpop.f32.mrb[0].mxu0
        %v803 = vadd.f32 0.0, %v802
        %v804 = vpop.f32.mrb[0].mxu0
        %v805 = vpop.f32.mrb[0].mxu0
        %v806 = vadd.f32 0.0, %v805
        %v807 = vpop.f32.mrb[0].mxu0
        %808 = vdwg.mxu0
        %v809 = vpack.c.bf16 %v521, %v518
        %v810 = vpack.c.bf16 %v529, %v526
        %v811 = vpack.c.bf16 %v537, %v534
        %v812 = vpack.c.bf16 %v545, %v542
        %v813 = vpack.c.bf16 %v553, %v550
        %v814 = vpack.c.bf16 %v561, %v558
        %v815 = vpack.c.bf16 %v569, %v566
        %v816 = vpack.c.bf16 %v577, %v574
        %v817 = vpack.c.bf16 %v585, %v582
        %v818 = vpack.c.bf16 %v593, %v590
        %v819 = vpack.c.bf16 %v601, %v598
        %v820 = vpack.c.bf16 %v609, %v606
        %v821 = vpack.c.bf16 %v617, %v614
        %v822 = vpack.c.bf16 %v625, %v622
        %v823 = vpack.c.bf16 %v633, %v630
        %v824 = vpack.c.bf16 %v641, %v638
        %v841 = vunpack.c.l.b16 %v809
        %v842 = vunpack.c.h.b16 %v809
        %v843 = vunpack.c.l.b16 %v810
        %v844 = vunpack.c.h.b16 %v810
        %v845 = vunpack.c.l.b16 %v811
        %v846 = vunpack.c.h.b16 %v811
        %v847 = vunpack.c.l.b16 %v812
        %v848 = vunpack.c.h.b16 %v812
        %v849 = vunpack.c.l.b16 %v813
        %v850 = vunpack.c.h.b16 %v813
        %v851 = vunpack.c.l.b16 %v814
        %v852 = vunpack.c.h.b16 %v814
        %v853 = vunpack.c.l.b16 %v815
        %v854 = vunpack.c.h.b16 %v815
        %v855 = vunpack.c.l.b16 %v816
        %v856 = vunpack.c.h.b16 %v816
        %v857 = vunpack.c.l.b16 %v817
        %v858 = vunpack.c.h.b16 %v817
        %v859 = vunpack.c.l.b16 %v818
        %v860 = vunpack.c.h.b16 %v818
        %v861 = vunpack.c.l.b16 %v819
        %v862 = vunpack.c.h.b16 %v819
        %v863 = vunpack.c.l.b16 %v820
        %v864 = vunpack.c.h.b16 %v820
        %v865 = vunpack.c.l.b16 %v821
        %v866 = vunpack.c.h.b16 %v821
        %v867 = vunpack.c.l.b16 %v822
        %v868 = vunpack.c.h.b16 %v822
        %v869 = vunpack.c.l.b16 %v823
        %v870 = vunpack.c.h.b16 %v823
        %v871 = vunpack.c.l.b16 %v824
        %v872 = vunpack.c.h.b16 %v824
        %v873 = vpack.c.b16 %v841, %v841
        %v874 = vpack.c.b16 %v842, %v842
        %v875 = vpack.c.b16 %v843, %v843
        %v876 = vpack.c.b16 %v844, %v844
        %v877 = vpack.c.b16 %v845, %v845
        %v878 = vpack.c.b16 %v846, %v846
        %v879 = vpack.c.b16 %v847, %v847
        %v880 = vpack.c.b16 %v848, %v848
        %v881 = vpack.c.b16 %v849, %v849
        %v882 = vpack.c.b16 %v850, %v850
        %v883 = vpack.c.b16 %v851, %v851
        %v884 = vpack.c.b16 %v852, %v852
        %v885 = vpack.c.b16 %v853, %v853
        %v886 = vpack.c.b16 %v854, %v854
        %v887 = vpack.c.b16 %v855, %v855
        %v888 = vpack.c.b16 %v856, %v856
        %v889 = vpack.c.b16 %v857, %v857
        %v890 = vpack.c.b16 %v858, %v858
        %v891 = vpack.c.b16 %v859, %v859
        %v892 = vpack.c.b16 %v860, %v860
        %v893 = vpack.c.b16 %v861, %v861
        %v894 = vpack.c.b16 %v862, %v862
        %v895 = vpack.c.b16 %v863, %v863
        %v896 = vpack.c.b16 %v864, %v864
        %v897 = vpack.c.b16 %v865, %v865
        %v898 = vpack.c.b16 %v866, %v866
        %v899 = vpack.c.b16 %v867, %v867
        %v900 = vpack.c.b16 %v868, %v868
        %v901 = vpack.c.b16 %v869, %v869
        %v902 = vpack.c.b16 %v870, %v870
        %v903 = vpack.c.b16 %v871, %v871
        %v904 = vpack.c.b16 %v872, %v872
        %vm937 = vcmask 27648
        %938 = vst.msk [vmem:[%s314] sm:$0xf] %vm937, %v873
        %939 = vst.msk [vmem:[%s314 + $0x4] sm:$0xf] %vm937, %v874
        %940 = vst.msk [vmem:[%s314 + $0x8] sm:$0xf] %vm937, %v875
        %941 = vst.msk [vmem:[%s314 + $0xc] sm:$0xf] %vm937, %v876
        %942 = vst.msk [vmem:[%s314 + $0x10] sm:$0xf] %vm937, %v877
        %943 = vst.msk [vmem:[%s314 + $0x14] sm:$0xf] %vm937, %v878
        %944 = vst.msk [vmem:[%s314 + $0x18] sm:$0xf] %vm937, %v879
        %945 = vst.msk [vmem:[%s314 + $0x1c] sm:$0xf] %vm937, %v880
        %946 = vst.msk [vmem:[%s314 + $0x20] sm:$0xf] %vm937, %v881
        %947 = vst.msk [vmem:[%s314 + $0x24] sm:$0xf] %vm937, %v882
        %948 = vst.msk [vmem:[%s314 + $0x28] sm:$0xf] %vm937, %v883
        %949 = vst.msk [vmem:[%s314 + $0x2c] sm:$0xf] %vm937, %v884
        %950 = vst.msk [vmem:[%s314 + $0x30] sm:$0xf] %vm937, %v885
        %951 = vst.msk [vmem:[%s314 + $0x34] sm:$0xf] %vm937, %v886
        %952 = vst.msk [vmem:[%s314 + $0x38] sm:$0xf] %vm937, %v887
        %953 = vst.msk [vmem:[%s314 + $0x3c] sm:$0xf] %vm937, %v888
        %954 = vst.msk [vmem:[%s314 + $0x40] sm:$0xf] %vm937, %v889
        %955 = vst.msk [vmem:[%s314 + $0x44] sm:$0xf] %vm937, %v890
        %956 = vst.msk [vmem:[%s314 + $0x48] sm:$0xf] %vm937, %v891
        %957 = vst.msk [vmem:[%s314 + $0x4c] sm:$0xf] %vm937, %v892
        %958 = vst.msk [vmem:[%s314 + $0x50] sm:$0xf] %vm937, %v893
        %959 = vst.msk [vmem:[%s314 + $0x54] sm:$0xf] %vm937, %v894
        %960 = vst.msk [vmem:[%s314 + $0x58] sm:$0xf] %vm937, %v895
        %961 = vst.msk [vmem:[%s314 + $0x5c] sm:$0xf] %vm937, %v896
        %962 = vst.msk [vmem:[%s314 + $0x60] sm:$0xf] %vm937, %v897
        %963 = vst.msk [vmem:[%s314 + $0x64] sm:$0xf] %vm937, %v898
        %964 = vst.msk [vmem:[%s314 + $0x68] sm:$0xf] %vm937, %v899
        %965 = vst.msk [vmem:[%s314 + $0x6c] sm:$0xf] %vm937, %v900
        %966 = vst.msk [vmem:[%s314 + $0x70] sm:$0xf] %vm937, %v901
        %967 = vst.msk [vmem:[%s314 + $0x74] sm:$0xf] %vm937, %v902
        %968 = vst.msk [vmem:[%s314 + $0x78] sm:$0xf] %vm937, %v903
        %969 = vst.msk [vmem:[%s314 + $0x7c] sm:$0xf] %vm937, %v904
        %v970 = vsel %vm430, %v518, 0.0
        %v971 = vsel %vm430, %v521, 0.0
        %v972 = vadd.f32 %v970, %v971
        %v973 = vsel %vm430, %v526, 0.0
        %v974 = vadd.f32 %v972, %v973
        %v975 = vsel %vm430, %v529, 0.0
        %v976 = vadd.f32 %v974, %v975
        %v977 = vsel %vm430, %v534, 0.0
        %v978 = vadd.f32 %v976, %v977
        %v979 = vsel %vm430, %v537, 0.0
        %v980 = vadd.f32 %v978, %v979
        %v981 = vsel %vm430, %v542, 0.0
        %v982 = vadd.f32 %v980, %v981
        %v983 = vsel %vm430, %v545, 0.0
        %v984 = vadd.f32 %v982, %v983
        %v985 = vsel %vm430, %v550, 0.0
        %v986 = vadd.f32 %v984, %v985
        %v987 = vsel %vm430, %v553, 0.0
        %v988 = vadd.f32 %v986, %v987
        %v989 = vsel %vm430, %v558, 0.0
        %v990 = vadd.f32 %v988, %v989
        %v991 = vsel %vm430, %v561, 0.0
        %v992 = vadd.f32 %v990, %v991
        %v993 = vsel %vm430, %v566, 0.0
        %v994 = vadd.f32 %v992, %v993
        %v995 = vsel %vm430, %v569, 0.0
        %v996 = vadd.f32 %v994, %v995
        %v997 = vsel %vm430, %v574, 0.0
        %v998 = vadd.f32 %v996, %v997
        %v999 = vsel %vm430, %v577, 0.0
        %v1000 = vadd.f32 %v998, %v999
        %v1001 = vsel %vm430, %v582, 0.0
        %v1002 = vadd.f32 %v1000, %v1001
        %v1003 = vsel %vm430, %v585, 0.0
        %v1004 = vadd.f32 %v1002, %v1003
        %v1005 = vsel %vm430, %v590, 0.0
        %v1006 = vadd.f32 %v1004, %v1005
        %v1007 = vsel %vm430, %v593, 0.0
        %v1008 = vadd.f32 %v1006, %v1007
        %v1009 = vsel %vm430, %v598, 0.0
        %v1010 = vadd.f32 %v1008, %v1009
        %v1011 = vsel %vm430, %v601, 0.0
        %v1012 = vadd.f32 %v1010, %v1011
        %v1013 = vsel %vm430, %v606, 0.0
        %v1014 = vadd.f32 %v1012, %v1013
        %v1015 = vsel %vm430, %v609, 0.0
        %v1016 = vadd.f32 %v1014, %v1015
        %v1017 = vsel %vm430, %v614, 0.0
        %v1018 = vadd.f32 %v1016, %v1017
        %v1019 = vsel %vm430, %v617, 0.0
        %v1020 = vadd.f32 %v1018, %v1019
        %v1021 = vsel %vm430, %v622, 0.0
        %v1022 = vadd.f32 %v1020, %v1021
        %v1023 = vsel %vm430, %v625, 0.0
        %v1024 = vadd.f32 %v1022, %v1023
        %v1025 = vsel %vm430, %v630, 0.0
        %v1026 = vadd.f32 %v1024, %v1025
        %v1027 = vsel %vm430, %v633, 0.0
        %v1028 = vadd.f32 %v1026, %v1027
        %v1029 = vsel %vm430, %v638, 0.0
        %v1030 = vadd.f32 %v1028, %v1029
        %v1031 = vsel %vm430, %v641, 0.0
        %v1032 = vadd.f32 %v1030, %v1031
        %v1033 = vrot.slane %v1032, 4
        %v1034 = vadd.f32 %v1032, %v1033
        %v1035 = vrot.slane %v1034, 2
        %v1036 = vadd.f32 %v1034, %v1035
        %v1037 = vrot.slane %v1036, 1
        %v1038 = vadd.f32 %v1036, %v1037
        %vm1039 = vcmask 24576
        %1040 = vst.msk [vmem:[%s285] sm:$0x1] %vm1039, %v1038
        %v1041 = vmul.f32 %v518, %v518
        %v1042 = vmul.f32 %v521, %v521
        %v1043 = vmul.f32 %v526, %v526
        %v1044 = vmul.f32 %v529, %v529
        %v1045 = vmul.f32 %v534, %v534
        %v1046 = vmul.f32 %v537, %v537
        %v1047 = vmul.f32 %v542, %v542
        %v1048 = vmul.f32 %v545, %v545
        %v1049 = vmul.f32 %v550, %v550
        %v1050 = vmul.f32 %v553, %v553
        %v1051 = vmul.f32 %v558, %v558
        %v1052 = vmul.f32 %v561, %v561
        %v1053 = vmul.f32 %v566, %v566
        %v1054 = vmul.f32 %v569, %v569
        %v1055 = vmul.f32 %v574, %v574
        %v1056 = vmul.f32 %v577, %v577
        %v1057 = vmul.f32 %v582, %v582
        %v1058 = vmul.f32 %v585, %v585
        %v1059 = vmul.f32 %v590, %v590
        %v1060 = vmul.f32 %v593, %v593
        %v1061 = vmul.f32 %v598, %v598
        %v1062 = vmul.f32 %v601, %v601
        %v1063 = vmul.f32 %v606, %v606
        %v1064 = vmul.f32 %v609, %v609
        %v1065 = vmul.f32 %v614, %v614
        %v1066 = vmul.f32 %v617, %v617
        %v1067 = vmul.f32 %v622, %v622
        %v1068 = vmul.f32 %v625, %v625
        %v1069 = vmul.f32 %v630, %v630
        %v1070 = vmul.f32 %v633, %v633
        %v1071 = vmul.f32 %v638, %v638
        %v1072 = vmul.f32 %v641, %v641
        %v1073 = vsel %vm430, %v1041, 0.0
        %v1074 = vsel %vm430, %v1042, 0.0
        %v1075 = vadd.f32 %v1073, %v1074
        %v1076 = vsel %vm430, %v1043, 0.0
        %v1077 = vadd.f32 %v1075, %v1076
        %v1078 = vsel %vm430, %v1044, 0.0
        %v1079 = vadd.f32 %v1077, %v1078
        %v1080 = vsel %vm430, %v1045, 0.0
        %v1081 = vadd.f32 %v1079, %v1080
        %v1082 = vsel %vm430, %v1046, 0.0
        %v1083 = vadd.f32 %v1081, %v1082
        %v1084 = vsel %vm430, %v1047, 0.0
        %v1085 = vadd.f32 %v1083, %v1084
        %v1086 = vsel %vm430, %v1048, 0.0
        %v1087 = vadd.f32 %v1085, %v1086
        %v1088 = vsel %vm430, %v1049, 0.0
        %v1089 = vadd.f32 %v1087, %v1088
        %v1090 = vsel %vm430, %v1050, 0.0
        %v1091 = vadd.f32 %v1089, %v1090
        %v1092 = vsel %vm430, %v1051, 0.0
        %v1093 = vadd.f32 %v1091, %v1092
        %v1094 = vsel %vm430, %v1052, 0.0
        %v1095 = vadd.f32 %v1093, %v1094
        %v1096 = vsel %vm430, %v1053, 0.0
        %v1097 = vadd.f32 %v1095, %v1096
        %v1098 = vsel %vm430, %v1054, 0.0
        %v1099 = vadd.f32 %v1097, %v1098
        %v1100 = vsel %vm430, %v1055, 0.0
        %v1101 = vadd.f32 %v1099, %v1100
        %v1102 = vsel %vm430, %v1056, 0.0
        %v1103 = vadd.f32 %v1101, %v1102
        %v1104 = vsel %vm430, %v1057, 0.0
        %v1105 = vadd.f32 %v1103, %v1104
        %v1106 = vsel %vm430, %v1058, 0.0
        %v1107 = vadd.f32 %v1105, %v1106
        %v1108 = vsel %vm430, %v1059, 0.0
        %v1109 = vadd.f32 %v1107, %v1108
        %v1110 = vsel %vm430, %v1060, 0.0
        %v1111 = vadd.f32 %v1109, %v1110
        %v1112 = vsel %vm430, %v1061, 0.0
        %v1113 = vadd.f32 %v1111, %v1112
        %v1114 = vsel %vm430, %v1062, 0.0
        %v1115 = vadd.f32 %v1113, %v1114
        %v1116 = vsel %vm430, %v1063, 0.0
        %v1117 = vadd.f32 %v1115, %v1116
        %v1118 = vsel %vm430, %v1064, 0.0
        %v1119 = vadd.f32 %v1117, %v1118
        %v1120 = vsel %vm430, %v1065, 0.0
        %v1121 = vadd.f32 %v1119, %v1120
        %v1122 = vsel %vm430, %v1066, 0.0
        %v1123 = vadd.f32 %v1121, %v1122
        %v1124 = vsel %vm430, %v1067, 0.0
        %v1125 = vadd.f32 %v1123, %v1124
        %v1126 = vsel %vm430, %v1068, 0.0
        %v1127 = vadd.f32 %v1125, %v1126
        %v1128 = vsel %vm430, %v1069, 0.0
        %v1129 = vadd.f32 %v1127, %v1128
        %v1130 = vsel %vm430, %v1070, 0.0
        %v1131 = vadd.f32 %v1129, %v1130
        %v1132 = vsel %vm430, %v1071, 0.0
        %v1133 = vadd.f32 %v1131, %v1132
        %v1134 = vsel %vm430, %v1072, 0.0
        %v1135 = vadd.f32 %v1133, %v1134
        %v1136 = vrot.slane %v1135, 4
        %v1137 = vadd.f32 %v1135, %v1136
        %v1138 = vrot.slane %v1137, 2
        %v1139 = vadd.f32 %v1137, %v1138
        %v1140 = vrot.slane %v1139, 1
        %v1141 = vadd.f32 %v1139, %v1140
        %1142 = vst.msk [vmem:[%s291] sm:$0x1] %vm1039, %v1141
        %vm1143 = vcmask 130048
        %v1144 = vsel %vm1143, %v683, 0.0
        %v1145 = vsel %vm1143, %v686, 0.0
        %v1146 = vadd.f32 %v1144, %v1145
        %v1147 = vsel %vm1143, %v691, 0.0
        %v1148 = vadd.f32 %v1146, %v1147
        %v1149 = vsel %vm1143, %v694, 0.0
        %v1150 = vadd.f32 %v1148, %v1149
        %v1151 = vsel %vm1143, %v699, 0.0
        %v1152 = vadd.f32 %v1150, %v1151
        %v1153 = vsel %vm1143, %v702, 0.0
        %v1154 = vadd.f32 %v1152, %v1153
        %v1155 = vsel %vm1143, %v707, 0.0
        %v1156 = vadd.f32 %v1154, %v1155
        %v1157 = vsel %vm1143, %v710, 0.0
        %v1158 = vadd.f32 %v1156, %v1157
        %v1159 = vsel %vm1143, %v715, 0.0
        %v1160 = vadd.f32 %v1158, %v1159
        %v1161 = vsel %vm1143, %v718, 0.0
        %v1162 = vadd.f32 %v1160, %v1161
        %v1163 = vsel %vm1143, %v723, 0.0
        %v1164 = vadd.f32 %v1162, %v1163
        %v1165 = vsel %vm1143, %v726, 0.0
        %v1166 = vadd.f32 %v1164, %v1165
        %v1167 = vsel %vm1143, %v731, 0.0
        %v1168 = vadd.f32 %v1166, %v1167
        %v1169 = vsel %vm1143, %v734, 0.0
        %v1170 = vadd.f32 %v1168, %v1169
        %v1171 = vsel %vm1143, %v739, 0.0
        %v1172 = vadd.f32 %v1170, %v1171
        %v1173 = vsel %vm1143, %v742, 0.0
        %v1174 = vadd.f32 %v1172, %v1173
        %v1175 = vsel %vm1143, %v747, 0.0
        %v1176 = vadd.f32 %v1174, %v1175
        %v1177 = vsel %vm1143, %v750, 0.0
        %v1178 = vadd.f32 %v1176, %v1177
        %v1179 = vsel %vm1143, %v755, 0.0
        %v1180 = vadd.f32 %v1178, %v1179
        %v1181 = vsel %vm1143, %v758, 0.0
        %v1182 = vadd.f32 %v1180, %v1181
        %v1183 = vsel %vm1143, %v763, 0.0
        %v1184 = vadd.f32 %v1182, %v1183
        %v1185 = vsel %vm1143, %v766, 0.0
        %v1186 = vadd.f32 %v1184, %v1185
        %v1187 = vsel %vm1143, %v771, 0.0
        %v1188 = vadd.f32 %v1186, %v1187
        %v1189 = vsel %vm1143, %v774, 0.0
        %v1190 = vadd.f32 %v1188, %v1189
        %v1191 = vsel %vm1143, %v779, 0.0
        %v1192 = vadd.f32 %v1190, %v1191
        %v1193 = vsel %vm1143, %v782, 0.0
        %v1194 = vadd.f32 %v1192, %v1193
        %v1195 = vsel %vm1143, %v787, 0.0
        %v1196 = vadd.f32 %v1194, %v1195
        %v1197 = vsel %vm1143, %v790, 0.0
        %v1198 = vadd.f32 %v1196, %v1197
        %v1199 = vsel %vm1143, %v795, 0.0
        %v1200 = vadd.f32 %v1198, %v1199
        %v1201 = vsel %vm1143, %v798, 0.0
        %v1202 = vadd.f32 %v1200, %v1201
        %v1203 = vsel %vm1143, %v803, 0.0
        %v1204 = vadd.f32 %v1202, %v1203
        %v1205 = vsel %vm1143, %v806, 0.0
        %v1206 = vadd.f32 %v1204, %v1205
        %v1207 = vrot.slane %v1206, 4
        %v1208 = vadd.f32 %v1206, %v1207
        %v1209 = vrot.slane %v1208, 2
        %v1210 = vadd.f32 %v1208, %v1209
        %v1211 = vrot.slane %v1210, 1
        %v1212 = vadd.f32 %v1210, %v1211
        %vm1213 = vcmask 122880
        %1214 = vst.msk [vmem:[%s297] sm:$0x1] %vm1213, %v1212
        %v1215 = vmul.f32 %v683, %v683
        %v1216 = vmul.f32 %v686, %v686
        %v1217 = vmul.f32 %v691, %v691
        %v1218 = vmul.f32 %v694, %v694
        %v1219 = vmul.f32 %v699, %v699
        %v1220 = vmul.f32 %v702, %v702
        %v1221 = vmul.f32 %v707, %v707
        %v1222 = vmul.f32 %v710, %v710
        %v1223 = vmul.f32 %v715, %v715
        %v1224 = vmul.f32 %v718, %v718
        %v1225 = vmul.f32 %v723, %v723
        %v1226 = vmul.f32 %v726, %v726
        %v1227 = vmul.f32 %v731, %v731
        %v1228 = vmul.f32 %v734, %v734
        %v1229 = vmul.f32 %v739, %v739
        %v1230 = vmul.f32 %v742, %v742
        %v1231 = vmul.f32 %v747, %v747
        %v1232 = vmul.f32 %v750, %v750
        %v1233 = vmul.f32 %v755, %v755
        %v1234 = vmul.f32 %v758, %v758
        %v1235 = vmul.f32 %v763, %v763
        %v1236 = vmul.f32 %v766, %v766
        %v1237 = vmul.f32 %v771, %v771
        %v1238 = vmul.f32 %v774, %v774
        %v1239 = vmul.f32 %v779, %v779
        %v1240 = vmul.f32 %v782, %v782
        %v1241 = vmul.f32 %v787, %v787
        %v1242 = vmul.f32 %v790, %v790
        %v1243 = vmul.f32 %v795, %v795
        %v1244 = vmul.f32 %v798, %v798
        %v1245 = vmul.f32 %v803, %v803
        %v1246 = vmul.f32 %v806, %v806
        %v1247 = vsel %vm1143, %v1215, 0.0
        %v1248 = vsel %vm1143, %v1216, 0.0
        %v1249 = vadd.f32 %v1247, %v1248
        %v1250 = vsel %vm1143, %v1217, 0.0
        %v1251 = vadd.f32 %v1249, %v1250
        %v1252 = vsel %vm1143, %v1218, 0.0
        %v1253 = vadd.f32 %v1251, %v1252
        %v1254 = vsel %vm1143, %v1219, 0.0
        %v1255 = vadd.f32 %v1253, %v1254
        %v1256 = vsel %vm1143, %v1220, 0.0
        %v1257 = vadd.f32 %v1255, %v1256
        %v1258 = vsel %vm1143, %v1221, 0.0
        %v1259 = vadd.f32 %v1257, %v1258
        %v1260 = vsel %vm1143, %v1222, 0.0
        %v1261 = vadd.f32 %v1259, %v1260
        %v1262 = vsel %vm1143, %v1223, 0.0
        %v1263 = vadd.f32 %v1261, %v1262
        %v1264 = vsel %vm1143, %v1224, 0.0
        %v1265 = vadd.f32 %v1263, %v1264
        %v1266 = vsel %vm1143, %v1225, 0.0
        %v1267 = vadd.f32 %v1265, %v1266
        %v1268 = vsel %vm1143, %v1226, 0.0
        %v1269 = vadd.f32 %v1267, %v1268
        %v1270 = vsel %vm1143, %v1227, 0.0
        %v1271 = vadd.f32 %v1269, %v1270
        %v1272 = vsel %vm1143, %v1228, 0.0
        %v1273 = vadd.f32 %v1271, %v1272
        %v1274 = vsel %vm1143, %v1229, 0.0
        %v1275 = vadd.f32 %v1273, %v1274
        %v1276 = vsel %vm1143, %v1230, 0.0
        %v1277 = vadd.f32 %v1275, %v1276
        %v1278 = vsel %vm1143, %v1231, 0.0
        %v1279 = vadd.f32 %v1277, %v1278
        %v1280 = vsel %vm1143, %v1232, 0.0
        %v1281 = vadd.f32 %v1279, %v1280
        %v1282 = vsel %vm1143, %v1233, 0.0
        %v1283 = vadd.f32 %v1281, %v1282
        %v1284 = vsel %vm1143, %v1234, 0.0
        %v1285 = vadd.f32 %v1283, %v1284
        %v1286 = vsel %vm1143, %v1235, 0.0
        %v1287 = vadd.f32 %v1285, %v1286
        %v1288 = vsel %vm1143, %v1236, 0.0
        %v1289 = vadd.f32 %v1287, %v1288
        %v1290 = vsel %vm1143, %v1237, 0.0
        %v1291 = vadd.f32 %v1289, %v1290
        %v1292 = vsel %vm1143, %v1238, 0.0
        %v1293 = vadd.f32 %v1291, %v1292
        %v1294 = vsel %vm1143, %v1239, 0.0
        %v1295 = vadd.f32 %v1293, %v1294
        %v1296 = vsel %vm1143, %v1240, 0.0
        %v1297 = vadd.f32 %v1295, %v1296
        %v1298 = vsel %vm1143, %v1241, 0.0
        %v1299 = vadd.f32 %v1297, %v1298
        %v1300 = vsel %vm1143, %v1242, 0.0
        %v1301 = vadd.f32 %v1299, %v1300
        %v1302 = vsel %vm1143, %v1243, 0.0
        %v1303 = vadd.f32 %v1301, %v1302
        %v1304 = vsel %vm1143, %v1244, 0.0
        %v1305 = vadd.f32 %v1303, %v1304
        %v1306 = vsel %vm1143, %v1245, 0.0
        %v1307 = vadd.f32 %v1305, %v1306
        %v1308 = vsel %vm1143, %v1246, 0.0
        %v1309 = vadd.f32 %v1307, %v1308
        %v1310 = vrot.slane %v1309, 4
        %v1311 = vadd.f32 %v1309, %v1310
        %v1312 = vrot.slane %v1311, 2
        %v1313 = vadd.f32 %v1311, %v1312
        %v1314 = vrot.slane %v1313, 1
        %v1315 = vadd.f32 %v1313, %v1314
        %1316 = vst.msk [vmem:[%s303] sm:$0x1] %vm1213, %v1315
        %s1317 = smul.u32 32, %s28
        %p1318 = scmp.lt.s32.totalorder %s1317, 63
        %s1319 = scalar_select %p1318, %s1317, 63
        %s1320 = smul.addr %s1319, 4
        %s1321 = scalar_lea.vmem %s3, %s1320
        %s1322 = sand.u32 %s130, 1
        %s1323 = scalar_lea.sflag [#allocation3], %s1322
        %s1324 = sand.u32 %s130, 1
        %s1325 = scalar_lea.vmem [#allocation2], %s1324
        %s1326 = sand.u32 %s28, 1
        %s1327 = scalar_lea.sflag [#allocation5], %s1326
        %s1328 = sand.u32 %s156, 1
        %s1329 = scalar_lea.vmem [#allocation4], %s1328
        %s1330 = sand.u32 %s28, 1
        %s1331 = scalar_lea.sflag [#allocation5], %s1330
        %s1332 = sand.u32 %s182, 1
        %s1333 = scalar_lea.vmem [#allocation6], %s1332
        %s1334 = sand.u32 %s208, 1
        %s1335 = scalar_lea.sflag [#allocation8], %s1334
        %s1336 = sand.u32 %s208, 1
        %s1337 = scalar_lea.vmem [#allocation7], %s1336
        // Predicated region
        $region33: #{tpu_custom_call.1} parent=31 // pred_check
          %p1338 = pneg %p114
        $region34: #{tpu_custom_call.1} parent=31 // pred_check_branch
          %1340 = sbr.rel (%p1338) target = $region36
        $region35: #{tpu_custom_call.1} parent=31 // pred_region
          %s1341 = smul.u32 32, %s28
        $region36: #{tpu_custom_call.1} parent=31 // pred_fallthru
          _
        // Predicated region
        $region37: #{tpu_custom_call.1} parent=31 // pred_check
          %p1342 = pneg %p140
        $region38: #{tpu_custom_call.1} parent=31 // pred_check_branch
          %1344 = sbr.rel (%p1342) target = $region40
        $region39: #{tpu_custom_call.1} parent=31 // pred_region
          %s1346 = ssub.s32 16, 16
          %1347 = vsyncadd %s1323, %s1346
          %s1348 = smul.addr %s28, 16
          %s1349 = scalar_lea.hbm %s4, %s1348
          %s1351 = sshll.u32 %s1325, 4
          %s1352 = int_to_ptr.vmem [resolvable:$true] %s1351
          %1354 = dma.vmem_to_hbm [thread:$0]  %s1352, 16, %s1349, %s1323
        $region40: #{tpu_custom_call.1} parent=31 // pred_fallthru
          _
        // Predicated region
        $region41: #{tpu_custom_call.1} parent=31 // pred_check
          %p1355 = pneg %p166
        $region42: #{tpu_custom_call.1} parent=31 // pred_check_branch
          %1357 = sbr.rel (%p1355) target = $region44
        $region43: #{tpu_custom_call.1} parent=31 // pred_region
          %s1359 = ssub.s32 16, 16
          %1360 = vsyncadd %s1327, %s1359
          %s1361 = smul.addr %s28, 16
          %s1362 = scalar_lea.hbm %s5, %s1361
          %s1364 = sshll.u32 %s1329, 4
          %s1365 = int_to_ptr.vmem [resolvable:$true] %s1364
          %1367 = dma.vmem_to_hbm [thread:$0]  %s1365, 16, %s1362, %s1327
        $region44: #{tpu_custom_call.1} parent=31 // pred_fallthru
          _
        // Predicated region
        $region45: #{tpu_custom_call.1} parent=31 // pred_check
          %p1368 = pneg %p192
        $region46: #{tpu_custom_call.1} parent=31 // pred_check_branch
          %1370 = sbr.rel (%p1368) target = $region48
        $region47: #{tpu_custom_call.1} parent=31 // pred_region
          %s1372 = ssub.s32 16, 16
          %1373 = vsyncadd %s1331, %s1372
          %s1374 = smul.addr %s28, 16
          %s1375 = scalar_lea.hbm %s6, %s1374
          %s1377 = sshll.u32 %s1333, 4
          %s1378 = int_to_ptr.vmem [resolvable:$true] %s1377
          %1380 = dma.vmem_to_hbm [thread:$0]  %s1378, 16, %s1375, %s1331
        $region48: #{tpu_custom_call.1} parent=31 // pred_fallthru
          _
        // Predicated region
        $region49: #{tpu_custom_call.1} parent=31 // pred_check
          %p1381 = pneg %p218
        $region50: #{tpu_custom_call.1} parent=31 // pred_check_branch
          %1383 = sbr.rel (%p1381) target = $region52
        $region51: #{tpu_custom_call.1} parent=31 // pred_region
          %s1385 = ssub.s32 16, 16
          %1386 = vsyncadd %s1335, %s1385
          %s1387 = smul.addr %s28, 16
          %s1388 = scalar_lea.hbm %s7, %s1387
          %s1390 = sshll.u32 %s1337, 4
          %s1391 = int_to_ptr.vmem [resolvable:$true] %s1390
          %1393 = dma.vmem_to_hbm [thread:$0]  %s1391, 16, %s1388, %s1335
        $region52: #{tpu_custom_call.1} parent=31 // pred_fallthru
          _
      $region32: #{tpu_custom_call.1} parent=5 // pred_fallthru
        _
      %p1394 = scmp.le.s32.totalorder 2, %s23
      // Predicated region
      $region53: #{tpu_custom_call.1} parent=5 // pred_check
        %p1395 = pneg %p1394
      $region54: #{tpu_custom_call.1} parent=5 // pred_check_branch
        %1397 = sbr.rel (%p1395) target = $region56
      $region55: #{tpu_custom_call.1} parent=5 // pred_region
        %s1398 = ssub.s32 %s23, 2
        // Predicated region
        $region57: #{tpu_custom_call.1} parent=55 // pred_check
          %p1399 = pneg %p120
        $region58: #{tpu_custom_call.1} parent=55 // pred_check_branch
          %1401 = sbr.rel (%p1399) target = $region60
        $region59: #{tpu_custom_call.1} parent=55 // pred_region
          %s1402 = smul.u32 32, %s29
          %p1403 = scmp.lt.s32.totalorder %s1402, 63
          %s1404 = scalar_select %p1403, %s1402, 63
          %s1405 = smul.addr %s1404, 4
          %s1406 = scalar_lea.vmem %s3, %s1405
        $region60: #{tpu_custom_call.1} parent=55 // pred_fallthru
          _
        // Predicated region
        $region61: #{tpu_custom_call.1} parent=55 // pred_check
          %p1407 = pneg %p146
        $region62: #{tpu_custom_call.1} parent=55 // pred_check_branch
          %1409 = sbr.rel (%p1407) target = $region64
        $region63: #{tpu_custom_call.1} parent=55 // pred_region
          %s1410 = sand.u32 %s131, 1
          %s1411 = scalar_lea.sflag [#allocation3], %s1410
          %s1412 = sand.u32 %s131, 1
          %s1413 = scalar_lea.vmem [#allocation2], %s1412
          %1414 = dma.done %s1411, 16
        $region64: #{tpu_custom_call.1} parent=55 // pred_fallthru
          _
        // Predicated region
        $region65: #{tpu_custom_call.1} parent=55 // pred_check
          %p1415 = pneg %p172
        $region66: #{tpu_custom_call.1} parent=55 // pred_check_branch
          %1417 = sbr.rel (%p1415) target = $region68
        $region67: #{tpu_custom_call.1} parent=55 // pred_region
          %s1418 = sand.u32 %s29, 1
          %s1419 = scalar_lea.sflag [#allocation5], %s1418
          %s1420 = sand.u32 %s157, 1
          %s1421 = scalar_lea.vmem [#allocation4], %s1420
          %1422 = dma.done %s1419, 16
        $region68: #{tpu_custom_call.1} parent=55 // pred_fallthru
          _
        // Predicated region
        $region69: #{tpu_custom_call.1} parent=55 // pred_check
          %p1423 = pneg %p198
        $region70: #{tpu_custom_call.1} parent=55 // pred_check_branch
          %1425 = sbr.rel (%p1423) target = $region72
        $region71: #{tpu_custom_call.1} parent=55 // pred_region
          %s1426 = sand.u32 %s29, 1
          %s1427 = scalar_lea.sflag [#allocation5], %s1426
          %s1428 = sand.u32 %s183, 1
          %s1429 = scalar_lea.vmem [#allocation6], %s1428
          %1430 = dma.done %s1427, 16
        $region72: #{tpu_custom_call.1} parent=55 // pred_fallthru
          _
        // Predicated region
        $region73: #{tpu_custom_call.1} parent=55 // pred_check
          %p1431 = pneg %p224
        $region74: #{tpu_custom_call.1} parent=55 // pred_check_branch
          %1433 = sbr.rel (%p1431) target = $region76
        $region75: #{tpu_custom_call.1} parent=55 // pred_region
          %s1434 = sand.u32 %s209, 1
          %s1435 = scalar_lea.sflag [#allocation8], %s1434
          %s1436 = sand.u32 %s209, 1
          %s1437 = scalar_lea.vmem [#allocation7], %s1436
          %1438 = dma.done %s1435, 16
        $region76: #{tpu_custom_call.1} parent=55 // pred_fallthru
          _
      $region56: #{tpu_custom_call.1} parent=5 // pred_fallthru
        _
    $region6: #{tpu_custom_call.1} parent=1 // loop_footer
      %s27 = sadd.s32 1, %s23
    $region7: #{tpu_custom_call.1} parent=1 // loop_footer_branch
      %22 = sbr.rel target = $region3
    $region8: #{tpu_custom_call.1} parent=1 // loop_exit
      _
    %1439 = vsyncpa [#allocation3], 1
    %s1440 = scalar_lea.sflag [#allocation3], 1
    %1441 = vsyncpa %s1440, 1
    %1442 = vsyncpa [#allocation5], 1
    %s1443 = scalar_lea.sflag [#allocation5], 1
    %1444 = vsyncpa %s1443, 1
    %1445 = vsyncpa [#allocation8], 1
    %s1446 = scalar_lea.sflag [#allocation8], 1
    %1447 = vsyncpa %s1446, 1

</llo_original>
